<compile_context>
chip_gen: v6e
topology: v6e:2x2x1
jax: 0.10.0
libtpu: 0.0.40
codegen_flags: <defaults>
</compile_context>

<pallas_src>
import math

import jax
import jax.numpy as jnp
from jax.experimental import pallas as pl
from jax.experimental.pallas import tpu as pltpu

f32 = jnp.float32
bf16 = jnp.bfloat16


# ----------------------------------------------------------------------------
# helpers
# ----------------------------------------------------------------------------
def _round_up(v, m):
    return ((v + m - 1) // m) * m


def _tile_for(dim, cap):
    """Return (tile, padded_dim).

    Pads to a multiple of 128 only (never to the tile cap), then picks the
    largest 128-multiple tile <= cap that divides the padded dim, preferring
    tiles that leave >= 2 row tiles so v7x's two TensorCores are both used on
    'parallel' grid axes."""
    pad = _round_up(max(dim, 1), 128)
    cands = [t for t in range(128, min(cap, pad) + 1, 128) if pad % t == 0]
    if not cands:
        cands = [128]
    multi = [t for t in cands if pad // t >= 2]
    tile = max(multi) if multi else max(cands)
    return tile, pad


def _pad_cast(a, rows, cols, dtype):
    """Zero-pad to (rows, cols) only when needed, then cast (no copy chain
    when the operand is already 128-aligned)."""
    if a.shape != (rows, cols):
        a = jnp.pad(a, ((0, rows - a.shape[0]), (0, cols - a.shape[1])))
    return a.astype(dtype)


# ----------------------------------------------------------------------------
# kernels
# ----------------------------------------------------------------------------
def _support_kernel(alpha_ref, adj_ref, sx_ref, xi_ref, w_ref, sup_ref, acc_ref):
    """support = (adj @ (s1*x) + alpha*x) @ weight, tiled over (row, k)."""
    k = pl.program_id(1)

    @pl.when(k == 0)
    def _init():
        # Fused "+ alpha * x": accumulator starts at alpha*x (bf16 stream of x
        # upcast to f32, alpha scalar from SMEM) -> no support3/4 temporaries.
        acc_ref[...] = alpha_ref[0, 0] * xi_ref[...].astype(jnp.float32)

    # Pure MXU push: diag(s1)@x was precomputed once in XLA and arrives bf16.
    acc_ref[...] += jnp.dot(adj_ref[...], sx_ref[...],
                            preferred_element_type=jnp.float32)

    @pl.when(k == pl.num_programs(1) - 1)
    def _finalize():
        sup_ref[...] = jnp.dot(acc_ref[...].astype(jnp.bfloat16), w_ref[...],
                               preferred_element_type=jnp.float32
                               ).astype(sup_ref.dtype)


def _output_kernel(inc_ref, sup_ref, out_ref, acc_ref):
    """output = incidence @ support, tiled over (row, k)."""
    k = pl.program_id(1)

    @pl.when(k == 0)
    def _init():
        acc_ref[...] = jnp.zeros_like(acc_ref)

    acc_ref[...] += jnp.dot(inc_ref[...], sup_ref[...],
                            preferred_element_type=jnp.float32)

    @pl.when(k == pl.num_programs(1) - 1)
    def _finalize():
        out_ref[...] = acc_ref[...]


# ----------------------------------------------------------------------------
# wrapper
# ----------------------------------------------------------------------------
def hypergraph_attention_isomorphism(x, adj, incidence, weight, attn, alpha,
                                     *, tile_cap=None):
    """x: [N, F_in], adj: [N, N], incidence: [M, N],
    weight: [F_in, F_out], attn: [F_in, 1], alpha: [1]  ->  [M, F_out] (f32)."""
    N, Fi = x.shape
    M = incidence.shape[0]
    Fo = weight.shape[1]

    Fi_pad = _round_up(Fi, 128)             # lane-dense feature dims
    Fo_pad = _round_up(Fo, 128)

    # Larger tiles when the feature dims keep the per-step working set small
    # (per-step VMEM stays far below every generation's scoped limit).
    if tile_cap is None:
        tile_cap = 512 if max(Fi_pad, Fo_pad) <= 256 else 256

    tn, N_pad = _tile_for(N, tile_cap)      # row tile / K tile over nodes
    tm, M_pad = _tile_for(M, tile_cap)      # row tile over hyperedges
    n_row = N_pad // tn
    n_k = N_pad // tn
    m_row = M_pad // tm

    # Explicit scoped-VMEM budget (v5e default is only 16 MiB; keep headroom
    # under v7x's 64 MiB physical).
    vmem_limit = 48 * 1024 * 1024

    # ---- tiny global ops in XLA --------------------------------------------
    # logits = x @ attn is a trivial matvec; the softmax over nodes (dim 0) is
    # a GLOBAL reduction, so it lives between kernel phases.  diag(s1) @ x is
    # computed once here (it used to be redone per row-tile inside phase A).
    xf = x.astype(f32)
    logits = xf @ attn.astype(f32)                           # [N, 1]
    s1 = jax.nn.softmax(logits, axis=0)                      # softmax over nodes
    scaled_bf = _pad_cast(s1 * xf, N_pad, Fi_pad, bf16)      # diag(s1) @ x, bf16

    x_bf = _pad_cast(xf, N_pad, Fi_pad, bf16)                # single bf16 x stream
    adj_bf = _pad_cast(adj, N_pad, N_pad, bf16)
    inc_bf = _pad_cast(incidence, M_pad, N_pad, bf16)
    w_bf = _pad_cast(weight, Fi_pad, Fo_pad, bf16)
    alpha_sm = alpha.astype(f32).reshape(1, 1)

    # ---- phase A: support = (adj @ (s1*x) + alpha*x) @ weight ---------------
    cost_a = pl.CostEstimate(
        flops=2 * N_pad * N_pad * Fi_pad + 2 * N_pad * Fi_pad * Fo_pad,
        transcendentals=0,
        bytes_accessed=int(adj_bf.size * 2
                           + n_row * scaled_bf.size * 2      # restreamed per row tile
                           + x_bf.size * 2 + w_bf.size * 2
                           + N_pad * Fo_pad * 2),
    )
    support = pl.pallas_call(
        _support_kernel,
        grid=(n_row, n_k),                                   # reduction axis last
        out_shape=jax.ShapeDtypeStruct((N_pad, Fo_pad), bf16),
        in_specs=[
            pl.BlockSpec(memory_space=pltpu.MemorySpace.SMEM),     # alpha scalar
            pl.BlockSpec((tn, tn), lambda i, k: (i, k)),           # adj bf16
            pl.BlockSpec((tn, Fi_pad), lambda i, k: (k, 0)),       # s1*x bf16
            pl.BlockSpec((tn, Fi_pad), lambda i, k: (i, 0),        # x bf16 (alpha*x),
                         pipeline_mode=pl.Buffered(1)),            #  k-invariant
            pl.BlockSpec((Fi_pad, Fo_pad), lambda i, k: (0, 0),    # weight bf16,
                         pipeline_mode=pl.Buffered(1)),            #  grid-invariant
        ],
        out_specs=pl.BlockSpec((tn, Fo_pad), lambda i, k: (i, 0)),
        scratch_shapes=[pltpu.VMEM((tn, Fi_pad), f32)],
        compiler_params=pltpu.CompilerParams(
            dimension_semantics=("parallel", "arbitrary"),
            vmem_limit_bytes=vmem_limit),
        cost_estimate=cost_a,
    )(alpha_sm, adj_bf, scaled_bf, x_bf, w_bf)

    # ---- phase B: output = incidence @ support -------------------------------
    cost_b = pl.CostEstimate(
        flops=2 * M_pad * N_pad * Fo_pad,
        transcendentals=0,
        bytes_accessed=int(inc_bf.size * 2
                           + m_row * N_pad * Fo_pad * 2      # support restream
                           + M_pad * Fo_pad * 4),
    )
    out = pl.pallas_call(
        _output_kernel,
        grid=(m_row, n_k),
        out_shape=jax.ShapeDtypeStruct((M_pad, Fo_pad), f32),
        in_specs=[
            pl.BlockSpec((tm, tn), lambda i, k: (i, k)),           # incidence bf16
            pl.BlockSpec((tn, Fo_pad), lambda i, k: (k, 0)),       # support bf16
        ],
        out_specs=pl.BlockSpec((tm, Fo_pad), lambda i, k: (i, 0)),
        scratch_shapes=[pltpu.VMEM((tm, Fo_pad), f32)],
        compiler_params=pltpu.CompilerParams(
            dimension_semantics=("parallel", "arbitrary"),
            vmem_limit_bytes=vmem_limit),
        cost_estimate=cost_b,
    )(inc_bf, support)

    return out[:M, :Fo]


# ----------------------------------------------------------------------------
# references
# ----------------------------------------------------------------------------
def reference_f32(x, adj, inc, w, attn, alpha):
    logits = x @ attn                                    # [N, 1]
    s1 = jax.nn.softmax(logits, axis=0)                  # softmax over nodes
    s3 = adj @ (s1 * x)
    s4 = s3 + alpha[0] * x
    return inc @ (s4 @ w)


def reference_bf16(x, adj, inc, w, attn, alpha):
    # Mirrors the kernel's mixed precision (bf16 MXU operands, f32 accumulate).
    logits = x @ attn
    s1 = jax.nn.softmax(logits, axis=0)
    scaled = (s1 * x).astype(bf16)
    s3 = jnp.dot(adj.astype(bf16), scaled, preferred_element_type=f32)
    s4 = s3 + alpha[0] * x.astype(bf16).astype(f32)
    sup = jnp.dot(s4.astype(bf16), w.astype(bf16),
                  preferred_element_type=f32).astype(bf16)
    return jnp.dot(inc.astype(bf16), sup, preferred_element_type=f32)


# ----------------------------------------------------------------------------
if __name__ == "__main__":
    # Non-256-aligned, multi-tile problem: N_pad=384 (3x128 tiles), M_pad=384.
    N, M = 384, 320                     # nodes, hyperedges
    in_features, out_features = 32, 48

    key = jax.random.PRNGKey(0)
    k_x, k_adj, k_inc, k_w, k_a, k_al = jax.random.split(key, 6)

    # Parameter init mirroring reset_parameters(): uniform(-stdv, stdv).
    stdv = 1.0 / math.sqrt(out_features)
    weight = jax.random.uniform(k_w, (in_features, out_features),
                                jnp.float32, -stdv, stdv)
    attn = jax.random.uniform(k_a, (in_features, 1), jnp.float32, -stdv, stdv)
    alpha = jax.random.uniform(k_al, (1,), jnp.float32)   # torch.rand(1)

    x = jax.random.normal(k_x, (N, in_features), jnp.float32)
    adj = jax.random.uniform(k_adj, (N, N), jnp.float32)
    incidence = jax.random.uniform(k_inc, (M, N), jnp.float32)

    fn = jax.jit(hypergraph_attention_isomorphism)
    out = jax.block_until_ready(fn(x, adj, incidence, weight, attn, alpha))
    assert out.shape == (M, out_features)

    ref32 = reference_f32(x, adj, incidence, weight, attn, alpha)
    refbf = reference_bf16(x, adj, incidence, weight, attn, alpha)
    scale = float(jnp.max(jnp.abs(ref32))) + 1e-6

    err_bf = float(jnp.max(jnp.abs(out - refbf)))
    err_32 = float(jnp.max(jnp.abs(out - ref32)))
    # Tight check vs a bf16-consistent reference; looser semantic check vs f32.
    assert err_bf <= 1e-2 * scale + 1e-2, f"bf16-consistent mismatch: {err_bf}"
    assert err_32 <= 5e-2 * scale + 5e-2, f"semantic mismatch vs f32 ref: {err_32}"

    print("KERNEL_OK")
</pallas_src>

<mosaic_0001>
module attributes {stable_mosaic.version = 11 : i64} {
  func.func @_support_kernel(%arg0: i32, %arg1: i32, %arg2: memref<1x1xf32, #tpu.memory_space<smem>>, %arg3: memref<128x128xbf16, #tpu.memory_space<vmem>>, %arg4: memref<128x128xbf16, #tpu.memory_space<vmem>>, %arg5: memref<128x128xbf16, #tpu.memory_space<vmem>>, %arg6: memref<128x128xbf16, #tpu.memory_space<vmem>>, %arg7: memref<128x128xbf16, #tpu.memory_space<vmem>>, %arg8: memref<128x128xf32, #tpu.memory_space<vmem>>) attributes {dimension_semantics = [#tpu.dimension_semantics<parallel>, #tpu.dimension_semantics<arbitrary>], iteration_bounds = array<i64: 3, 3>, scalar_prefetch = 0 : i64, scratch_operands = 1 : i64, tpu.core_type = #tpu.core_type<tc>, window_params = [{transform_indices = @transform_0, window_bounds = array<i64: 1, 1>}, {transform_indices = @transform_1, window_bounds = array<i64: 128, 128>}, {transform_indices = @transform_2, window_bounds = array<i64: 128, 128>}, {pipeline_mode = #tpu.pipeline_mode<synchronous>, transform_indices = @transform_3, window_bounds = array<i64: 128, 128>}, {pipeline_mode = #tpu.pipeline_mode<synchronous>, transform_indices = @transform_4, window_bounds = array<i64: 128, 128>}, {transform_indices = @transform_5, window_bounds = array<i64: 128, 128>}]} {
    %c0_i32 = arith.constant 0 : i32
    %0 = arith.cmpi eq, %arg1, %c0_i32 : i32
    %1 = arith.extui %0 : i1 to i32
    %c0_i32_0 = arith.constant 0 : i32
    %2 = arith.cmpi ne, %1, %c0_i32_0 : i32
    scf.if %2 {
      %c0_9 = arith.constant 0 : index
      %c0_10 = arith.constant 0 : index
      %12 = memref.load %arg2[%c0_9, %c0_10] : memref<1x1xf32, #tpu.memory_space<smem>>
      %c0_11 = arith.constant 0 : index
      %c0_12 = arith.constant 0 : index
      %13 = vector.load %arg5[%c0_11, %c0_12] : memref<128x128xbf16, #tpu.memory_space<vmem>>, vector<128x128xbf16>
      %14 = arith.extf %13 : vector<128x128xbf16> to vector<128x128xf32>
      %15 = vector.broadcast %12 : f32 to vector<128x128xf32>
      %16 = arith.mulf %15, %14 : vector<128x128xf32>
      %c0_13 = arith.constant 0 : index
      %c0_14 = arith.constant 0 : index
      %17 = vector.load %arg8[%c0_13, %c0_14] : memref<128x128xf32, #tpu.memory_space<vmem>>, vector<128x128xf32>
      tpu.vector_store %arg8[%c0_13, %c0_14], %16 {strides = array<i32>} : memref<128x128xf32, #tpu.memory_space<vmem>>, vector<128x128xf32>,
    } else {
    }
    %c0 = arith.constant 0 : index
    %c0_1 = arith.constant 0 : index
    %3 = vector.load %arg8[%c0, %c0_1] : memref<128x128xf32, #tpu.memory_space<vmem>>, vector<128x128xf32>
    %c0_2 = arith.constant 0 : index
    %c0_3 = arith.constant 0 : index
    %4 = vector.load %arg3[%c0_2, %c0_3] : memref<128x128xbf16, #tpu.memory_space<vmem>>, vector<128x128xbf16>
    %c0_4 = arith.constant 0 : index
    %c0_5 = arith.constant 0 : index
    %5 = vector.load %arg4[%c0_4, %c0_5] : memref<128x128xbf16, #tpu.memory_space<vmem>>, vector<128x128xbf16>
    %cst = arith.constant dense<0.000000e+00> : vector<128x128xf32>
    %6 = tpu.matmul %4, %5, %cst {dimension_numbers = #tpu.dot_dimension_numbers<[1], [0], [0], [1], [0, 0, 1, 1], [], []>} : vector<128x128xbf16>, vector<128x128xbf16>, vector<128x128xf32> -> vector<128x128xf32>
    %7 = arith.addf %3, %6 : vector<128x128xf32>
    %c0_6 = arith.constant 0 : index
    %c0_7 = arith.constant 0 : index
    %8 = vector.load %arg8[%c0_6, %c0_7] : memref<128x128xf32, #tpu.memory_space<vmem>>, vector<128x128xf32>
    tpu.vector_store %arg8[%c0_6, %c0_7], %7 {strides = array<i32>} : memref<128x128xf32, #tpu.memory_space<vmem>>, vector<128x128xf32>,
    %c2_i32 = arith.constant 2 : i32
    %9 = arith.cmpi eq, %arg1, %c2_i32 : i32
    %10 = arith.extui %9 : i1 to i32
    %c0_i32_8 = arith.constant 0 : i32
    %11 = arith.cmpi ne, %10, %c0_i32_8 : i32
    scf.if %11 {
      %c0_9 = arith.constant 0 : index
      %c0_10 = arith.constant 0 : index
      %12 = vector.load %arg8[%c0_9, %c0_10] : memref<128x128xf32, #tpu.memory_space<vmem>>, vector<128x128xf32>
      %13 = arith.truncf %12 : vector<128x128xf32> to vector<128x128xbf16>
      %c0_11 = arith.constant 0 : index
      %c0_12 = arith.constant 0 : index
      %14 = vector.load %arg6[%c0_11, %c0_12] : memref<128x128xbf16, #tpu.memory_space<vmem>>, vector<128x128xbf16>
      %cst_13 = arith.constant dense<0.000000e+00> : vector<128x128xf32>
      %15 = tpu.matmul %13, %14, %cst_13 {dimension_numbers = #tpu.dot_dimension_numbers<[1], [0], [0], [1], [0, 0, 1, 1], [], []>} : vector<128x128xbf16>, vector<128x128xbf16>, vector<128x128xf32> -> vector<128x128xf32>
      %16 = arith.truncf %15 : vector<128x128xf32> to vector<128x128xbf16>
      %c0_14 = arith.constant 0 : index
      %c0_15 = arith.constant 0 : index
      %17 = vector.load %arg7[%c0_14, %c0_15] : memref<128x128xbf16, #tpu.memory_space<vmem>>, vector<128x128xbf16>
      tpu.vector_store %arg7[%c0_14, %c0_15], %16 {strides = array<i32>} : memref<128x128xbf16, #tpu.memory_space<vmem>>, vector<128x128xbf16>,
    } else {
    }
    return
  }
  func.func @transform_0(%arg0: i32, %arg1: i32) -> (i32, i32) {
    %c0_i32 = arith.constant 0 : i32
    %c0_i32_0 = arith.constant 0 : i32
    %c0_i32_1 = arith.constant 0 : i32
    return %c0_i32, %c0_i32_0 : i32, i32
  }
  func.func @transform_1(%arg0: i32, %arg1: i32) -> (i32, i32) {
    %c0_i32 = arith.constant 0 : i32
    return %arg0, %arg1 : i32, i32
  }
  func.func @transform_2(%arg0: i32, %arg1: i32) -> (i32, i32) {
    %c0_i32 = arith.constant 0 : i32
    %c0_i32_0 = arith.constant 0 : i32
    return %arg1, %c0_i32 : i32, i32
  }
  func.func @transform_3(%arg0: i32, %arg1: i32) -> (i32, i32) {
    %c0_i32 = arith.constant 0 : i32
    %c0_i32_0 = arith.constant 0 : i32
    return %arg0, %c0_i32 : i32, i32
  }
  func.func @transform_4(%arg0: i32, %arg1: i32) -> (i32, i32) {
    %c0_i32 = arith.constant 0 : i32
    %c0_i32_0 = arith.constant 0 : i32
    %c0_i32_1 = arith.constant 0 : i32
    return %c0_i32, %c0_i32_0 : i32, i32
  }
  func.func @transform_5(%arg0: i32, %arg1: i32) -> (i32, i32) {
    %c0_i32 = arith.constant 0 : i32
    %c0_i32_0 = arith.constant 0 : i32
    return %arg0, %c0_i32 : i32, i32
  }
}

module attributes {stable_mosaic.version = 11 : i64} {
  func.func @_output_kernel(%arg0: i32, %arg1: i32, %arg2: memref<128x128xbf16, #tpu.memory_space<vmem>>, %arg3: memref<128x128xbf16, #tpu.memory_space<vmem>>, %arg4: memref<128x128xf32, #tpu.memory_space<vmem>>, %arg5: memref<128x128xf32, #tpu.memory_space<vmem>>) attributes {dimension_semantics = [#tpu.dimension_semantics<parallel>, #tpu.dimension_semantics<arbitrary>], iteration_bounds = array<i64: 3, 3>, scalar_prefetch = 0 : i64, scratch_operands = 1 : i64, tpu.core_type = #tpu.core_type<tc>, window_params = [{transform_indices = @transform_0, window_bounds = array<i64: 128, 128>}, {transform_indices = @transform_1, window_bounds = array<i64: 128, 128>}, {transform_indices = @transform_2, window_bounds = array<i64: 128, 128>}]} {
    %c0_i32 = arith.constant 0 : i32
    %0 = arith.cmpi eq, %arg1, %c0_i32 : i32
    %1 = arith.extui %0 : i1 to i32
    %c0_i32_0 = arith.constant 0 : i32
    %2 = arith.cmpi ne, %1, %c0_i32_0 : i32
    scf.if %2 {
      %cst_9 = arith.constant 0.000000e+00 : f32
      %12 = vector.broadcast %cst_9 : f32 to vector<128x128xf32>
      %c0_10 = arith.constant 0 : index
      %c0_11 = arith.constant 0 : index
      %13 = vector.load %arg5[%c0_10, %c0_11] : memref<128x128xf32, #tpu.memory_space<vmem>>, vector<128x128xf32>
      tpu.vector_store %arg5[%c0_10, %c0_11], %12 {strides = array<i32>} : memref<128x128xf32, #tpu.memory_space<vmem>>, vector<128x128xf32>,
    } else {
    }
    %c0 = arith.constant 0 : index
    %c0_1 = arith.constant 0 : index
    %3 = vector.load %arg5[%c0, %c0_1] : memref<128x128xf32, #tpu.memory_space<vmem>>, vector<128x128xf32>
    %c0_2 = arith.constant 0 : index
    %c0_3 = arith.constant 0 : index
    %4 = vector.load %arg2[%c0_2, %c0_3] : memref<128x128xbf16, #tpu.memory_space<vmem>>, vector<128x128xbf16>
    %c0_4 = arith.constant 0 : index
    %c0_5 = arith.constant 0 : index
    %5 = vector.load %arg3[%c0_4, %c0_5] : memref<128x128xbf16, #tpu.memory_space<vmem>>, vector<128x128xbf16>
    %cst = arith.constant dense<0.000000e+00> : vector<128x128xf32>
    %6 = tpu.matmul %4, %5, %cst {dimension_numbers = #tpu.dot_dimension_numbers<[1], [0], [0], [1], [0, 0, 1, 1], [], []>} : vector<128x128xbf16>, vector<128x128xbf16>, vector<128x128xf32> -> vector<128x128xf32>
    %7 = arith.addf %3, %6 : vector<128x128xf32>
    %c0_6 = arith.constant 0 : index
    %c0_7 = arith.constant 0 : index
    %8 = vector.load %arg5[%c0_6, %c0_7] : memref<128x128xf32, #tpu.memory_space<vmem>>, vector<128x128xf32>
    tpu.vector_store %arg5[%c0_6, %c0_7], %7 {strides = array<i32>} : memref<128x128xf32, #tpu.memory_space<vmem>>, vector<128x128xf32>,
    %c2_i32 = arith.constant 2 : i32
    %9 = arith.cmpi eq, %arg1, %c2_i32 : i32
    %10 = arith.extui %9 : i1 to i32
    %c0_i32_8 = arith.constant 0 : i32
    %11 = arith.cmpi ne, %10, %c0_i32_8 : i32
    scf.if %11 {
      %c0_9 = arith.constant 0 : index
      %c0_10 = arith.constant 0 : index
      %12 = vector.load %arg5[%c0_9, %c0_10] : memref<128x128xf32, #tpu.memory_space<vmem>>, vector<128x128xf32>
      %c0_11 = arith.constant 0 : index
      %c0_12 = arith.constant 0 : index
      %13 = vector.load %arg4[%c0_11, %c0_12] : memref<128x128xf32, #tpu.memory_space<vmem>>, vector<128x128xf32>
      tpu.vector_store %arg4[%c0_11, %c0_12], %12 {strides = array<i32>} : memref<128x128xf32, #tpu.memory_space<vmem>>, vector<128x128xf32>,
    } else {
    }
    return
  }
  func.func @transform_0(%arg0: i32, %arg1: i32) -> (i32, i32) {
    %c0_i32 = arith.constant 0 : i32
    return %arg0, %arg1 : i32, i32
  }
  func.func @transform_1(%arg0: i32, %arg1: i32) -> (i32, i32) {
    %c0_i32 = arith.constant 0 : i32
    %c0_i32_0 = arith.constant 0 : i32
    return %arg1, %c0_i32 : i32, i32
  }
  func.func @transform_2(%arg0: i32, %arg1: i32) -> (i32, i32) {
    %c0_i32 = arith.constant 0 : i32
    %c0_i32_0 = arith.constant 0 : i32
    return %arg0, %c0_i32 : i32, i32
  }
}

</mosaic_0001>

<llo_original>
// kernel: hypergraph_attention_isomorphism.3
$region0: #{hypergraph_attention_isomorphism.3}
  #allocation0 [shape = 'u32[]', space=smem, size = 0x4, offset = 0x4, fixed_abs, tag = 'smem constant byte address 0x4 - core index']
  #allocation1 [shape = 'u32[144,128]{1,0:T(1,128)}', space=vmem, size = 0x12000, scoped, tag = 'internal scratch']
  #allocation2 [shape = 'f32[128,128]{1,0:T(8,128)}', space=vmem, size = 0x10000, scoped, tag = 'scratch operand']
  %s0 = inlined_call_operand.vmem [shape: bf16[384,384], index: 0, kind: input, shape index: {}]
  %s1 = inlined_call_operand.vmem [shape: bf16[384,128], index: 1, kind: input, shape index: {}]
  %s2 = inlined_call_operand.vmem [shape: f32[384,128], index: 2, kind: output, shape index: {}]
  %s3 = sld [smem:[#allocation0]]
  $region90: #{hypergraph_attention_isomorphism.3} parent=0
    _
  %s5 = ssub.s32 1, %s3
  %s6 = scalar_select 0, %s5, %s3
  $region1: #{hypergraph_attention_isomorphism.3} parent=0
    #allocation3 [shape = 'u8[65536]{0}', space=vmem, size = 0x10000, scoped, tag = 'input window, operand 0']
    loop: start=0, step=1, limit=11
    $region2: #{hypergraph_attention_isomorphism.3} parent=1 // loop_pre_header
      _
    $region3: #{hypergraph_attention_isomorphism.3} parent=1 // loop_header
      %s8 = sphi 0, %s12
      %p9 = scmp.ge.s32.totalorder %s8, 11
      %s15 = sphi 0, %s27
      %s16 = sphi 0, %s23
      %s17 = sphi 0, %s15
      %s18 = sphi 0, %s16
      %s19 = sphi 0, %s17
      %s20 = sphi 0, %s18
      %s32 = sphi 0, %s34
      %s35 = sphi 0, %s32
      %s36 = sphi 0, %s35
      %s52 = sphi 0, %s36
      %s58 = sphi 0, %s60
      %s61 = sphi 0, %s58
      %s62 = sphi 0, %s61
      %s78 = sphi 0, %s62
      %s84 = sphi 0, %s86
      %s87 = sphi 0, %s84
      %s88 = sphi 0, %s87
      %s104 = sphi 0, %s88
    $region4: #{hypergraph_attention_isomorphism.3} parent=1 // loop_header_branch
      %11 = sbr.rel (%p9) target = $region8
    $region5: #{hypergraph_attention_isomorphism.3} parent=1 // loop_body
      %s13 = ssub.s32 %s8, 1
      %s14 = ssub.s32 %s8, 2
      %s21 = sadd.s32 1, %s16
      %p22 = scmp.ge.s32.totalorder %s21, 3
      %s23 = scalar_select %p22, 0, %s21
      %s24 = sadd.s32 1, %s15
      %s25 = scalar_select %p22, %s24, %s15
      %p26 = scmp.ge.s32.totalorder %s25, 3
      %s27 = scalar_select %p26, 0, %s25
      %s28 = ssub.s32 %s15, %s27
      %s29 = ssub.s32 %s16, %s23
      %s30 = sor.u32 %s28, %s29
      %p31 = scmp.eq.s32.totalorder %s30, 0
      %s33 = sadd.s32 %s32, 1
      %s34 = scalar_select %p31, %s32, %s33
      %p37 = pneg %p31
      %p38 = scmp.eq.s32.totalorder %s8, 8
      %p39 = por %p37, %p38
      %p40 = scmp.ne.s32.totalorder %s32, %s35
      %p41 = scmp.eq.s32.totalorder %s8, 0
      %p42 = por %p40, %p41
      %p43 = scmp.ne.s32.totalorder %s32, %s35
      %p44 = scmp.eq.s32.totalorder %s13, 8
      %p45 = por %p43, %p44
      %p46 = scmp.ne.s32.totalorder %s35, %s36
      %p47 = scmp.eq.s32.totalorder %s13, 0
      %p48 = por %p46, %p47
      %p49 = scmp.ne.s32.totalorder %s35, %s36
      %p50 = scmp.eq.s32.totalorder %s14, 8
      %p51 = por %p49, %p50
      %p53 = scmp.ne.s32.totalorder %s36, %s52
      %p54 = scmp.eq.s32.totalorder %s14, 0
      %p55 = por %p53, %p54
      %s56 = ssub.s32 %s16, %s23
      %p57 = scmp.eq.s32.totalorder %s56, 0
      %s59 = sadd.s32 %s58, 1
      %s60 = scalar_select %p57, %s58, %s59
      %p63 = pneg %p57
      %p64 = scmp.eq.s32.totalorder %s8, 8
      %p65 = por %p63, %p64
      %p66 = scmp.ne.s32.totalorder %s58, %s61
      %p67 = scmp.eq.s32.totalorder %s8, 0
      %p68 = por %p66, %p67
      %p69 = scmp.ne.s32.totalorder %s58, %s61
      %p70 = scmp.eq.s32.totalorder %s13, 8
      %p71 = por %p69, %p70
      %p72 = scmp.ne.s32.totalorder %s61, %s62
      %p73 = scmp.eq.s32.totalorder %s13, 0
      %p74 = por %p72, %p73
      %p75 = scmp.ne.s32.totalorder %s61, %s62
      %p76 = scmp.eq.s32.totalorder %s14, 8
      %p77 = por %p75, %p76
      %p79 = scmp.ne.s32.totalorder %s62, %s78
      %p80 = scmp.eq.s32.totalorder %s14, 0
      %p81 = por %p79, %p80
      %s82 = ssub.s32 %s15, %s27
      %p83 = scmp.eq.s32.totalorder %s82, 0
      %s85 = sadd.s32 %s84, 1
      %s86 = scalar_select %p83, %s84, %s85
      %p89 = pneg %p83
      %p90 = scmp.eq.s32.totalorder %s8, 8
      %p91 = por %p89, %p90
      %p92 = scmp.ne.s32.totalorder %s84, %s87
      %p93 = scmp.eq.s32.totalorder %s8, 0
      %p94 = por %p92, %p93
      %p95 = scmp.ne.s32.totalorder %s84, %s87
      %p96 = scmp.eq.s32.totalorder %s13, 8
      %p97 = por %p95, %p96
      %p98 = scmp.ne.s32.totalorder %s87, %s88
      %p99 = scmp.eq.s32.totalorder %s13, 0
      %p100 = por %p98, %p99
      %p101 = scmp.ne.s32.totalorder %s87, %s88
      %p102 = scmp.eq.s32.totalorder %s14, 8
      %p103 = por %p101, %p102
      %p105 = scmp.ne.s32.totalorder %s88, %s104
      %p106 = scmp.eq.s32.totalorder %s14, 0
      %p107 = por %p105, %p106
      %p108 = scmp.le.s32.totalorder 1, %s8
      %p109 = scmp.lt.s32.totalorder %s8, 10
      %p110 = pnand %p108, %p109
      %p111 = pneg %p110
      // Predicated region
      $region9: #{hypergraph_attention_isomorphism.3} parent=5 // pred_check
        _
      $region10: #{hypergraph_attention_isomorphism.3} parent=5 // pred_check_branch
        %113 = sbr.rel (%p110) target = $region12
      $region11: #{hypergraph_attention_isomorphism.3} parent=5 // pred_region
        %s114 = ssub.s32 %s8, 1
      $region12: #{hypergraph_attention_isomorphism.3} parent=5 // pred_fallthru
        _
      %p115 = scmp.lt.s32.totalorder %s8, 9
      // Predicated region
      $region13: #{hypergraph_attention_isomorphism.3} parent=5 // pred_check
        %p116 = pneg %p115
      $region14: #{hypergraph_attention_isomorphism.3} parent=5 // pred_check_branch
        %118 = sbr.rel (%p116) target = $region16
      $region15: #{hypergraph_attention_isomorphism.3} parent=5 // pred_region
        // Predicated region
        $region17: #{hypergraph_attention_isomorphism.3} parent=15 // pred_check
          %p119 = pneg %p42
        $region18: #{hypergraph_attention_isomorphism.3} parent=15 // pred_check_branch
          %121 = sbr.rel (%p119) target = $region20
        $region19: #{hypergraph_attention_isomorphism.3} parent=15 // pred_region
          %s122 = sand.u32 %s32, 1
          %s123 = sand.u32 %s32, 1
          %s124 = smul.addr %s123, 64
          %s125 = scalar_lea.vmem [#allocation3], %s124
          %s126 = smul.u32 16, %s15
          %s127 = smul.addr %s126, 3
          %s128 = sadd.s32 %s16, %s127
          %s129 = smul.addr %s128, 4
          %s130 = scalar_lea.vmem %s0, %s129
          // Predicated region
          $region21: #{hypergraph_attention_isomorphism.3} parent=19 // pred_check
            _
          $region22: #{hypergraph_attention_isomorphism.3} parent=19 // pred_check_branch
            %132 = sbr.rel (0) target = $region24
          $region23: #{hypergraph_attention_isomorphism.3} parent=19 // pred_region
            // Predicated region
            $region25: #{hypergraph_attention_isomorphism.3} parent=23 // pred_check
              _
            $region26: #{hypergraph_attention_isomorphism.3} parent=23 // pred_check_branch
              %134 = sbr.rel target = $region28
            $region27: #{hypergraph_attention_isomorphism.3} parent=23 // pred_region
              // Predicated region
              $region40: #{hypergraph_attention_isomorphism.3} parent=27 // pred_check
                _
              $region41: #{hypergraph_attention_isomorphism.3} parent=27 // pred_check_branch
                %180 = sbr.rel (0) target = $region43
              $region42: #{hypergraph_attention_isomorphism.3} parent=27 // pred_region
                loop: start=0, step=1, limit=1
                $region44: #{hypergraph_attention_isomorphism.3} parent=42 // loop_pre_header
                  _
                $region45: #{hypergraph_attention_isomorphism.3} parent=42 // loop_header
                  %s182 = sphi 0, %s186
                  %p183 = scmp.ge.s32.totalorder %s182, 1
                  %s187 = sphi %s130, %s130
                  %s188 = sphi %s125, %s125
                $region46: #{hypergraph_attention_isomorphism.3} parent=42 // loop_header_branch
                  %185 = sbr.rel (%p183) target = $region50
                $region47: #{hypergraph_attention_isomorphism.3} parent=42 // loop_body
                  _
                $region48: #{hypergraph_attention_isomorphism.3} parent=42 // loop_footer
                  %s186 = sadd.s32 1, %s182
                $region49: #{hypergraph_attention_isomorphism.3} parent=42 // loop_footer_branch
                  %181 = sbr.rel target = $region45
                $region50: #{hypergraph_attention_isomorphism.3} parent=42 // loop_exit
                  _
                %s190 = ssub.s32 16, 1
                loop: start=0, step=1, limit=1
                $region51: #{hypergraph_attention_isomorphism.3} parent=42 // loop_pre_header
                  _
                $region52: #{hypergraph_attention_isomorphism.3} parent=42 // loop_header
                  %s192 = sphi 0, %s196
                  %p193 = scmp.ge.s32.totalorder %s192, 1
                  %s197 = sphi %s130, %s130
                  %s198 = sphi %s125, %s125
                $region53: #{hypergraph_attention_isomorphism.3} parent=42 // loop_header_branch
                  %195 = sbr.rel (%p193) target = $region57
                $region54: #{hypergraph_attention_isomorphism.3} parent=42 // loop_body
                  %v199 = vld [vmem:[%s197] sm:%s190]
                  %200 = vst [vmem:[%s198] sm:%s190] %v199
                  %v201 = vld [vmem:[%s197 + $0xc] sm:%s190]
                  %202 = vst [vmem:[%s198 + $0x4] sm:%s190] %v201
                  %v203 = vld [vmem:[%s197 + $0x18] sm:%s190]
                  %204 = vst [vmem:[%s198 + $0x8] sm:%s190] %v203
                  %v205 = vld [vmem:[%s197 + $0x24] sm:%s190]
                  %206 = vst [vmem:[%s198 + $0xc] sm:%s190] %v205
                  %v207 = vld [vmem:[%s197 + $0x30] sm:%s190]
                  %208 = vst [vmem:[%s198 + $0x10] sm:%s190] %v207
                  %v209 = vld [vmem:[%s197 + $0x3c] sm:%s190]
                  %210 = vst [vmem:[%s198 + $0x14] sm:%s190] %v209
                  %v211 = vld [vmem:[%s197 + $0x48] sm:%s190]
                  %212 = vst [vmem:[%s198 + $0x18] sm:%s190] %v211
                  %v213 = vld [vmem:[%s197 + $0x54] sm:%s190]
                  %214 = vst [vmem:[%s198 + $0x1c] sm:%s190] %v213
                  %v215 = vld [vmem:[%s197 + $0x60] sm:%s190]
                  %216 = vst [vmem:[%s198 + $0x20] sm:%s190] %v215
                  %v217 = vld [vmem:[%s197 + $0x6c] sm:%s190]
                  %218 = vst [vmem:[%s198 + $0x24] sm:%s190] %v217
                  %v219 = vld [vmem:[%s197 + $0x78] sm:%s190]
                  %220 = vst [vmem:[%s198 + $0x28] sm:%s190] %v219
                  %v221 = vld [vmem:[%s197 + $0x84] sm:%s190]
                  %222 = vst [vmem:[%s198 + $0x2c] sm:%s190] %v221
                  %v223 = vld [vmem:[%s197 + $0x90] sm:%s190]
                  %224 = vst [vmem:[%s198 + $0x30] sm:%s190] %v223
                  %v225 = vld [vmem:[%s197 + $0x9c] sm:%s190]
                  %226 = vst [vmem:[%s198 + $0x34] sm:%s190] %v225
                  %v227 = vld [vmem:[%s197 + $0xa8] sm:%s190]
                  %228 = vst [vmem:[%s198 + $0x38] sm:%s190] %v227
                  %v229 = vld [vmem:[%s197 + $0xb4] sm:%s190]
                  %230 = vst [vmem:[%s198 + $0x3c] sm:%s190] %v229
                $region55: #{hypergraph_attention_isomorphism.3} parent=42 // loop_footer
                  %s196 = sadd.s32 1, %s192
                $region56: #{hypergraph_attention_isomorphism.3} parent=42 // loop_footer_branch
                  %191 = sbr.rel target = $region52
                $region57: #{hypergraph_attention_isomorphism.3} parent=42 // loop_exit
                  _
              $region43: #{hypergraph_attention_isomorphism.3} parent=27 // pred_fallthru
                _
            $region28: #{hypergraph_attention_isomorphism.3} parent=23 // pred_fallthru
              _
            // Predicated region
            $region29: #{hypergraph_attention_isomorphism.3} parent=23 // pred_check
              _
            $region30: #{hypergraph_attention_isomorphism.3} parent=23 // pred_check_branch
              %136 = sbr.rel (0) target = $region32
            $region31: #{hypergraph_attention_isomorphism.3} parent=23 // pred_region
              %s138 = ssub.s32 16, 1
              loop: start=0, step=1, limit=1
              $region33: #{hypergraph_attention_isomorphism.3} parent=31 // loop_pre_header
                _
              $region34: #{hypergraph_attention_isomorphism.3} parent=31 // loop_header
                %s140 = sphi 0, %s144
                %p141 = scmp.ge.s32.totalorder %s140, 1
                %s145 = sphi %s130, %s130
                %s146 = sphi %s125, %s125
              $region35: #{hypergraph_attention_isomorphism.3} parent=31 // loop_header_branch
                %143 = sbr.rel (%p141) target = $region39
              $region36: #{hypergraph_attention_isomorphism.3} parent=31 // loop_body
                %v147 = vld [vmem:[%s145] sm:%s138]
                %148 = vst [vmem:[%s146] sm:%s138] %v147
                %v149 = vld [vmem:[%s145 + $0xc] sm:%s138]
                %150 = vst [vmem:[%s146 + $0x4] sm:%s138] %v149
                %v151 = vld [vmem:[%s145 + $0x18] sm:%s138]
                %152 = vst [vmem:[%s146 + $0x8] sm:%s138] %v151
                %v153 = vld [vmem:[%s145 + $0x24] sm:%s138]
                %154 = vst [vmem:[%s146 + $0xc] sm:%s138] %v153
                %v155 = vld [vmem:[%s145 + $0x30] sm:%s138]
                %156 = vst [vmem:[%s146 + $0x10] sm:%s138] %v155
                %v157 = vld [vmem:[%s145 + $0x3c] sm:%s138]
                %158 = vst [vmem:[%s146 + $0x14] sm:%s138] %v157
                %v159 = vld [vmem:[%s145 + $0x48] sm:%s138]
                %160 = vst [vmem:[%s146 + $0x18] sm:%s138] %v159
                %v161 = vld [vmem:[%s145 + $0x54] sm:%s138]
                %162 = vst [vmem:[%s146 + $0x1c] sm:%s138] %v161
                %v163 = vld [vmem:[%s145 + $0x60] sm:%s138]
                %164 = vst [vmem:[%s146 + $0x20] sm:%s138] %v163
                %v165 = vld [vmem:[%s145 + $0x6c] sm:%s138]
                %166 = vst [vmem:[%s146 + $0x24] sm:%s138] %v165
                %v167 = vld [vmem:[%s145 + $0x78] sm:%s138]
                %168 = vst [vmem:[%s146 + $0x28] sm:%s138] %v167
                %v169 = vld [vmem:[%s145 + $0x84] sm:%s138]
                %170 = vst [vmem:[%s146 + $0x2c] sm:%s138] %v169
                %v171 = vld [vmem:[%s145 + $0x90] sm:%s138]
                %172 = vst [vmem:[%s146 + $0x30] sm:%s138] %v171
                %v173 = vld [vmem:[%s145 + $0x9c] sm:%s138]
                %174 = vst [vmem:[%s146 + $0x34] sm:%s138] %v173
                %v175 = vld [vmem:[%s145 + $0xa8] sm:%s138]
                %176 = vst [vmem:[%s146 + $0x38] sm:%s138] %v175
                %v177 = vld [vmem:[%s145 + $0xb4] sm:%s138]
                %178 = vst [vmem:[%s146 + $0x3c] sm:%s138] %v177
              $region37: #{hypergraph_attention_isomorphism.3} parent=31 // loop_footer
                %s144 = sadd.s32 1, %s140
              $region38: #{hypergraph_attention_isomorphism.3} parent=31 // loop_footer_branch
                %139 = sbr.rel target = $region34
              $region39: #{hypergraph_attention_isomorphism.3} parent=31 // loop_exit
                _
            $region32: #{hypergraph_attention_isomorphism.3} parent=23 // pred_fallthru
              _
          $region24: #{hypergraph_attention_isomorphism.3} parent=19 // pred_fallthru
            _
          %231 = vnop
        $region20: #{hypergraph_attention_isomorphism.3} parent=15 // pred_fallthru
          _
        // Predicated region
        $region58: #{hypergraph_attention_isomorphism.3} parent=15 // pred_check
          %p232 = pneg %p68
        $region59: #{hypergraph_attention_isomorphism.3} parent=15 // pred_check_branch
          %234 = sbr.rel (%p232) target = $region61
        $region60: #{hypergraph_attention_isomorphism.3} parent=15 // pred_region
          %s235 = smul.u32 16, %s16
          %p236 = scmp.lt.s32.totalorder %s235, 47
          %s237 = scalar_select %p236, %s235, 47
          %s238 = smul.addr %s237, 4
          %s239 = scalar_lea.vmem %s1, %s238
          %s240 = smul.u32 16, %s16
        $region61: #{hypergraph_attention_isomorphism.3} parent=15 // pred_fallthru
          _
      $region16: #{hypergraph_attention_isomorphism.3} parent=5 // pred_fallthru
        _
      %p241 = scmp.le.s32.totalorder 1, %s8
      %p242 = scmp.lt.s32.totalorder %s8, 10
      %p243 = pnand %p241, %p242
      %p244 = pneg %p243
      // Predicated region
      $region62: #{hypergraph_attention_isomorphism.3} parent=5 // pred_check
        _
      $region63: #{hypergraph_attention_isomorphism.3} parent=5 // pred_check_branch
        %246 = sbr.rel (%p243) target = $region65
      $region64: #{hypergraph_attention_isomorphism.3} parent=5 // pred_region
        %s247 = ssub.s32 %s8, 1
        %s248 = sand.u32 %s35, 1
        %s249 = sand.u32 %s35, 1
        %s250 = smul.addr %s249, 64
        %s251 = scalar_lea.vmem [#allocation3], %s250
        // Predicated region
        $region66: #{hypergraph_attention_isomorphism.3} parent=64 // pred_check
          %p252 = pneg %p48
        $region67: #{hypergraph_attention_isomorphism.3} parent=64 // pred_check_branch
          %254 = sbr.rel (%p252) target = $region69
        $region68: #{hypergraph_attention_isomorphism.3} parent=64 // pred_region
          _
        $region69: #{hypergraph_attention_isomorphism.3} parent=64 // pred_fallthru
          _
        %s255 = sand.u32 %s35, 1
        %s256 = sand.u32 %s35, 1
        %s257 = smul.addr %s256, 64
        %s258 = scalar_lea.vmem [#allocation3], %s257
        %p259 = pneg %p48
        %p260 = pneg %p45
        %s261 = smul.u32 16, %s18
        %p262 = scmp.lt.s32.totalorder %s261, 47
        %s263 = scalar_select %p262, %s261, 47
        %s264 = smul.addr %s263, 4
        %s265 = scalar_lea.vmem %s1, %s264
        %p266 = pneg %p74
        %p267 = pneg %p71
        %p268 = pneg %p100
        %p269 = pneg %p97
        %s270 = smul.u32 16, %s17
        %p271 = scmp.lt.s32.totalorder %s270, 47
        %s272 = scalar_select %p271, %s270, 47
        %s273 = smul.addr %s272, 8
        %s274 = scalar_lea.vmem %s2, %s273
        %s275 = smul.u32 16, %s17
        %s276 = smul.u32 16, %s18
        %p277 = scmp.lt.s32.totalorder %s276, 47
        %s278 = scalar_select %p277, %s276, 47
        %s279 = smul.addr %s278, 4
        %s280 = scalar_lea.vmem %s1, %s279
        %s281 = smul.u32 16, %s18
        %s282 = smul.u32 16, %s17
        %p283 = scmp.lt.s32.totalorder %s282, 47
        %s284 = scalar_select %p283, %s282, 47
        %s285 = smul.addr %s284, 8
        %s286 = scalar_lea.vmem %s2, %s285
        %s287 = smul.u32 16, %s17
        %p289 = scmp.eq.s32.totalorder %s18, 0
        // Predicated region
        $region70: #{hypergraph_attention_isomorphism.3} parent=64 // pred_check
          %p290 = pneg %p289
        $region71: #{hypergraph_attention_isomorphism.3} parent=64 // pred_check_branch
          %292 = sbr.rel (%p290) target = $region73
        $region72: #{hypergraph_attention_isomorphism.3} parent=64 // pred_region
          %293 = vst [vmem:[#allocation2] sm:$0xff] 0.0
          %294 = vst [vmem:[#allocation2 + $0x8] sm:$0xff] 0.0
          %295 = vst [vmem:[#allocation2 + $0x10] sm:$0xff] 0.0
          %296 = vst [vmem:[#allocation2 + $0x18] sm:$0xff] 0.0
          %297 = vst [vmem:[#allocation2 + $0x20] sm:$0xff] 0.0
          %298 = vst [vmem:[#allocation2 + $0x28] sm:$0xff] 0.0
          %299 = vst [vmem:[#allocation2 + $0x30] sm:$0xff] 0.0
          %300 = vst [vmem:[#allocation2 + $0x38] sm:$0xff] 0.0
          %301 = vst [vmem:[#allocation2 + $0x40] sm:$0xff] 0.0
          %302 = vst [vmem:[#allocation2 + $0x48] sm:$0xff] 0.0
          %303 = vst [vmem:[#allocation2 + $0x50] sm:$0xff] 0.0
          %304 = vst [vmem:[#allocation2 + $0x58] sm:$0xff] 0.0
          %305 = vst [vmem:[#allocation2 + $0x60] sm:$0xff] 0.0
          %306 = vst [vmem:[#allocation2 + $0x68] sm:$0xff] 0.0
          %307 = vst [vmem:[#allocation2 + $0x70] sm:$0xff] 0.0
          %308 = vst [vmem:[#allocation2 + $0x78] sm:$0xff] 0.0
        $region73: #{hypergraph_attention_isomorphism.3} parent=64 // pred_fallthru
          _
        %v309 = vld [vmem:[#allocation2] sm:$0xff]
        %v310 = vld [vmem:[#allocation2 + $0x8] sm:$0xff]
        %v311 = vld [vmem:[#allocation2 + $0x10] sm:$0xff]
        %v312 = vld [vmem:[#allocation2 + $0x18] sm:$0xff]
        %v313 = vld [vmem:[#allocation2 + $0x20] sm:$0xff]
        %v314 = vld [vmem:[#allocation2 + $0x28] sm:$0xff]
        %v315 = vld [vmem:[#allocation2 + $0x30] sm:$0xff]
        %v316 = vld [vmem:[#allocation2 + $0x38] sm:$0xff]
        %v317 = vld [vmem:[#allocation2 + $0x40] sm:$0xff]
        %v318 = vld [vmem:[#allocation2 + $0x48] sm:$0xff]
        %v319 = vld [vmem:[#allocation2 + $0x50] sm:$0xff]
        %v320 = vld [vmem:[#allocation2 + $0x58] sm:$0xff]
        %v321 = vld [vmem:[#allocation2 + $0x60] sm:$0xff]
        %v322 = vld [vmem:[#allocation2 + $0x68] sm:$0xff]
        %v323 = vld [vmem:[#allocation2 + $0x70] sm:$0xff]
        %v324 = vld [vmem:[#allocation2 + $0x78] sm:$0xff]
        %v325 = vld [vmem:[%s251] sm:$0xf]
        %v326 = vld [vmem:[%s251 + $0x4] sm:$0xf]
        %v327 = vld [vmem:[%s251 + $0x8] sm:$0xf]
        %v328 = vld [vmem:[%s251 + $0xc] sm:$0xf]
        %v329 = vld [vmem:[%s251 + $0x10] sm:$0xf]
        %v330 = vld [vmem:[%s251 + $0x14] sm:$0xf]
        %v331 = vld [vmem:[%s251 + $0x18] sm:$0xf]
        %v332 = vld [vmem:[%s251 + $0x1c] sm:$0xf]
        %v333 = vld [vmem:[%s251 + $0x20] sm:$0xf]
        %v334 = vld [vmem:[%s251 + $0x24] sm:$0xf]
        %v335 = vld [vmem:[%s251 + $0x28] sm:$0xf]
        %v336 = vld [vmem:[%s251 + $0x2c] sm:$0xf]
        %v337 = vld [vmem:[%s251 + $0x30] sm:$0xf]
        %v338 = vld [vmem:[%s251 + $0x34] sm:$0xf]
        %v339 = vld [vmem:[%s251 + $0x38] sm:$0xf]
        %v340 = vld [vmem:[%s251 + $0x3c] sm:$0xf]
        %v341 = vld [vmem:[%s280] sm:$0xf]
        %v342 = vld [vmem:[%s280 + $0x4] sm:$0xf]
        %v343 = vld [vmem:[%s280 + $0x8] sm:$0xf]
        %v344 = vld [vmem:[%s280 + $0xc] sm:$0xf]
        %v345 = vld [vmem:[%s280 + $0x10] sm:$0xf]
        %v346 = vld [vmem:[%s280 + $0x14] sm:$0xf]
        %v347 = vld [vmem:[%s280 + $0x18] sm:$0xf]
        %v348 = vld [vmem:[%s280 + $0x1c] sm:$0xf]
        %v349 = vld [vmem:[%s280 + $0x20] sm:$0xf]
        %v350 = vld [vmem:[%s280 + $0x24] sm:$0xf]
        %v351 = vld [vmem:[%s280 + $0x28] sm:$0xf]
        %v352 = vld [vmem:[%s280 + $0x2c] sm:$0xf]
        %v353 = vld [vmem:[%s280 + $0x30] sm:$0xf]
        %v354 = vld [vmem:[%s280 + $0x34] sm:$0xf]
        %v355 = vld [vmem:[%s280 + $0x38] sm:$0xf]
        %v356 = vld [vmem:[%s280 + $0x3c] sm:$0xf]
        %v373 = vunpack.c.l.b16 %v325
        %v374 = vunpack.c.l.b16 %v326
        %v375 = vunpack.c.l.b16 %v327
        %v376 = vunpack.c.l.b16 %v328
        %v377 = vunpack.c.l.b16 %v329
        %v378 = vunpack.c.l.b16 %v330
        %v379 = vunpack.c.l.b16 %v331
        %v380 = vunpack.c.l.b16 %v332
        %v381 = vunpack.c.l.b16 %v333
        %v382 = vunpack.c.l.b16 %v334
        %v383 = vunpack.c.l.b16 %v335
        %v384 = vunpack.c.l.b16 %v336
        %v385 = vunpack.c.l.b16 %v337
        %v386 = vunpack.c.l.b16 %v338
        %v387 = vunpack.c.l.b16 %v339
        %v388 = vunpack.c.l.b16 %v340
        %v389 = vpack.c.b16 %v374, %v373
        %v390 = vpack.c.b16 %v376, %v375
        %v391 = vpack.c.b16 %v378, %v377
        %v392 = vpack.c.b16 %v380, %v379
        %v393 = vpack.c.b16 %v382, %v381
        %v394 = vpack.c.b16 %v384, %v383
        %v395 = vpack.c.b16 %v386, %v385
        %v396 = vpack.c.b16 %v388, %v387
        %v421 = vunpack.c.l.b16 %v341
        %v422 = vunpack.c.l.b16 %v342
        %v423 = vunpack.c.l.b16 %v343
        %v424 = vunpack.c.l.b16 %v344
        %v425 = vunpack.c.l.b16 %v345
        %v426 = vunpack.c.l.b16 %v346
        %v427 = vunpack.c.l.b16 %v347
        %v428 = vunpack.c.l.b16 %v348
        %v429 = vunpack.c.l.b16 %v349
        %v430 = vunpack.c.l.b16 %v350
        %v431 = vunpack.c.l.b16 %v351
        %v432 = vunpack.c.l.b16 %v352
        %v433 = vunpack.c.l.b16 %v353
        %v434 = vunpack.c.l.b16 %v354
        %v435 = vunpack.c.l.b16 %v355
        %v436 = vunpack.c.l.b16 %v356
        %v437 = vpack.c.b16 %v422, %v421
        %v438 = vpack.c.b16 %v424, %v423
        %v439 = vpack.c.b16 %v426, %v425
        %v440 = vpack.c.b16 %v428, %v427
        %v441 = vpack.c.b16 %v430, %v429
        %v442 = vpack.c.b16 %v432, %v431
        %v443 = vpack.c.b16 %v434, %v433
        %v444 = vpack.c.b16 %v436, %v435
        %453 = vmatprep.subr.bf16.mxu0 0
        %454 = vmatpush1.bf16.msra.mxu0 %v444
        %455 = vmatprep.subr.bf16.mxu0 0
        %456 = vmatpush1.bf16.msra.mxu0 %v443
        %457 = vmatprep.subr.bf16.mxu0 0
        %458 = vmatpush1.bf16.msra.mxu0 %v442
        %459 = vmatprep.subr.bf16.mxu0 0
        %460 = vmatpush1.bf16.msra.mxu0 %v441
        %461 = vmatprep.subr.bf16.mxu0 0
        %462 = vmatpush1.bf16.msra.mxu0 %v440
        %463 = vmatprep.subr.bf16.mxu0 0
        %464 = vmatpush1.bf16.msra.mxu0 %v439
        %465 = vmatprep.subr.bf16.mxu0 0
        %466 = vmatpush1.bf16.msra.mxu0 %v438
        %467 = vmatprep.subr.bf16.mxu0 0
        %468 = vmatpush1.bf16.msra.mxu0 %v437
        %469 = vmatprep.subr.bf16.mxu0 0
        %470 = vmatpush2.bf16.msra.mxu0 0
        %471 = vmatprep.subr.bf16.mxu0 0
        %472 = vmatpush2.bf16.msra.mxu0 0
        %473 = vmatprep.subr.bf16.mxu0 0
        %474 = vmatpush2.bf16.msra.mxu0 0
        %475 = vmatprep.subr.bf16.mxu0 0
        %476 = vmatpush2.bf16.msra.mxu0 0
        %477 = vmatprep.subr.bf16.mxu0 0
        %478 = vmatpush2.bf16.msra.mxu0 0
        %479 = vmatprep.subr.bf16.mxu0 0
        %480 = vmatpush2.bf16.msra.mxu0 0
        %481 = vmatprep.subr.bf16.mxu0 0
        %482 = vmatpush2.bf16.msra.mxu0 0
        %483 = vmatprep.subr.bf16.mxu0 0
        %484 = vmatpush2.bf16.msra.mxu0 0
        %485 = vmatprep.mubr.bf16.mxu0 0
        %486 = vmatmul.mubr.bf16.gmra.mxu0 %v389
        %v487 = vpop.f32.mrf.mxu0
        %v488 = vadd.f32 0.0, %v487
        %v489 = vpop.f32.mrf.mxu0
        %v490 = vpop.f32.mrf.mxu0
        %v491 = vadd.f32 0.0, %v490
        %v492 = vpop.f32.mrf.mxu0
        %493 = vmatprep.mubr.bf16.mxu0 0
        %494 = vmatmul.mubr.bf16.gmra.mxu0 %v390
        %v495 = vpop.f32.mrf.mxu0
        %v496 = vadd.f32 0.0, %v495
        %v497 = vpop.f32.mrf.mxu0
        %v498 = vpop.f32.mrf.mxu0
        %v499 = vadd.f32 0.0, %v498
        %v500 = vpop.f32.mrf.mxu0
        %501 = vmatprep.mubr.bf16.mxu0 0
        %502 = vmatmul.mubr.bf16.gmra.mxu0 %v391
        %v503 = vpop.f32.mrf.mxu0
        %v504 = vadd.f32 0.0, %v503
        %v505 = vpop.f32.mrf.mxu0
        %v506 = vpop.f32.mrf.mxu0
        %v507 = vadd.f32 0.0, %v506
        %v508 = vpop.f32.mrf.mxu0
        %509 = vmatprep.mubr.bf16.mxu0 0
        %510 = vmatmul.mubr.bf16.gmra.mxu0 %v392
        %v511 = vpop.f32.mrf.mxu0
        %v512 = vadd.f32 0.0, %v511
        %v513 = vpop.f32.mrf.mxu0
        %v514 = vpop.f32.mrf.mxu0
        %v515 = vadd.f32 0.0, %v514
        %v516 = vpop.f32.mrf.mxu0
        %517 = vmatprep.mubr.bf16.mxu0 0
        %518 = vmatmul.mubr.bf16.gmra.mxu0 %v393
        %v519 = vpop.f32.mrf.mxu0
        %v520 = vadd.f32 0.0, %v519
        %v521 = vpop.f32.mrf.mxu0
        %v522 = vpop.f32.mrf.mxu0
        %v523 = vadd.f32 0.0, %v522
        %v524 = vpop.f32.mrf.mxu0
        %525 = vmatprep.mubr.bf16.mxu0 0
        %526 = vmatmul.mubr.bf16.gmra.mxu0 %v394
        %v527 = vpop.f32.mrf.mxu0
        %v528 = vadd.f32 0.0, %v527
        %v529 = vpop.f32.mrf.mxu0
        %v530 = vpop.f32.mrf.mxu0
        %v531 = vadd.f32 0.0, %v530
        %v532 = vpop.f32.mrf.mxu0
        %533 = vmatprep.mubr.bf16.mxu0 0
        %534 = vmatmul.mubr.bf16.gmra.mxu0 %v395
        %v535 = vpop.f32.mrf.mxu0
        %v536 = vadd.f32 0.0, %v535
        %v537 = vpop.f32.mrf.mxu0
        %v538 = vpop.f32.mrf.mxu0
        %v539 = vadd.f32 0.0, %v538
        %v540 = vpop.f32.mrf.mxu0
        %541 = vmatprep.mubr.bf16.mxu0 0
        %542 = vmatmul.mubr.bf16.gmra.mxu0 %v396
        %v543 = vpop.f32.mrf.mxu0
        %v544 = vadd.f32 0.0, %v543
        %v545 = vpop.f32.mrf.mxu0
        %v546 = vpop.f32.mrf.mxu0
        %v547 = vadd.f32 0.0, %v546
        %v548 = vpop.f32.mrf.mxu0
        %549 = vdwg.mxu0
        %v550 = vadd.f32 %v309, %v488
        %v551 = vadd.f32 %v310, %v491
        %v552 = vadd.f32 %v311, %v496
        %v553 = vadd.f32 %v312, %v499
        %v554 = vadd.f32 %v313, %v504
        %v555 = vadd.f32 %v314, %v507
        %v556 = vadd.f32 %v315, %v512
        %v557 = vadd.f32 %v316, %v515
        %v558 = vadd.f32 %v317, %v520
        %v559 = vadd.f32 %v318, %v523
        %v560 = vadd.f32 %v319, %v528
        %v561 = vadd.f32 %v320, %v531
        %v562 = vadd.f32 %v321, %v536
        %v563 = vadd.f32 %v322, %v539
        %v564 = vadd.f32 %v323, %v544
        %v565 = vadd.f32 %v324, %v547
        %566 = vst [vmem:[#allocation2] sm:$0xff] %v550
        %567 = vst [vmem:[#allocation2 + $0x8] sm:$0xff] %v551
        %568 = vst [vmem:[#allocation2 + $0x10] sm:$0xff] %v552
        %569 = vst [vmem:[#allocation2 + $0x18] sm:$0xff] %v553
        %570 = vst [vmem:[#allocation2 + $0x20] sm:$0xff] %v554
        %571 = vst [vmem:[#allocation2 + $0x28] sm:$0xff] %v555
        %572 = vst [vmem:[#allocation2 + $0x30] sm:$0xff] %v556
        %573 = vst [vmem:[#allocation2 + $0x38] sm:$0xff] %v557
        %574 = vst [vmem:[#allocation2 + $0x40] sm:$0xff] %v558
        %575 = vst [vmem:[#allocation2 + $0x48] sm:$0xff] %v559
        %576 = vst [vmem:[#allocation2 + $0x50] sm:$0xff] %v560
        %577 = vst [vmem:[#allocation2 + $0x58] sm:$0xff] %v561
        %578 = vst [vmem:[#allocation2 + $0x60] sm:$0xff] %v562
        %579 = vst [vmem:[#allocation2 + $0x68] sm:$0xff] %v563
        %580 = vst [vmem:[#allocation2 + $0x70] sm:$0xff] %v564
        %581 = vst [vmem:[#allocation2 + $0x78] sm:$0xff] %v565
        %p582 = scmp.eq.s32.totalorder %s18, 2
        // Predicated region
        $region74: #{hypergraph_attention_isomorphism.3} parent=64 // pred_check
          %p583 = pneg %p582
        $region75: #{hypergraph_attention_isomorphism.3} parent=64 // pred_check_branch
          %585 = sbr.rel (%p583) target = $region77
        $region76: #{hypergraph_attention_isomorphism.3} parent=64 // pred_region
          %v586 = vld [vmem:[#allocation2] sm:$0xff]
          %v587 = vld [vmem:[#allocation2 + $0x8] sm:$0xff]
          %v588 = vld [vmem:[#allocation2 + $0x10] sm:$0xff]
          %v589 = vld [vmem:[#allocation2 + $0x18] sm:$0xff]
          %v590 = vld [vmem:[#allocation2 + $0x20] sm:$0xff]
          %v591 = vld [vmem:[#allocation2 + $0x28] sm:$0xff]
          %v592 = vld [vmem:[#allocation2 + $0x30] sm:$0xff]
          %v593 = vld [vmem:[#allocation2 + $0x38] sm:$0xff]
          %v594 = vld [vmem:[#allocation2 + $0x40] sm:$0xff]
          %v595 = vld [vmem:[#allocation2 + $0x48] sm:$0xff]
          %v596 = vld [vmem:[#allocation2 + $0x50] sm:$0xff]
          %v597 = vld [vmem:[#allocation2 + $0x58] sm:$0xff]
          %v598 = vld [vmem:[#allocation2 + $0x60] sm:$0xff]
          %v599 = vld [vmem:[#allocation2 + $0x68] sm:$0xff]
          %v600 = vld [vmem:[#allocation2 + $0x70] sm:$0xff]
          %v601 = vld [vmem:[#allocation2 + $0x78] sm:$0xff]
          %602 = vst [vmem:[%s286] sm:$0xff] %v586
          %603 = vst [vmem:[%s286 + $0x8] sm:$0xff] %v587
          %604 = vst [vmem:[%s286 + $0x10] sm:$0xff] %v588
          %605 = vst [vmem:[%s286 + $0x18] sm:$0xff] %v589
          %606 = vst [vmem:[%s286 + $0x20] sm:$0xff] %v590
          %607 = vst [vmem:[%s286 + $0x28] sm:$0xff] %v591
          %608 = vst [vmem:[%s286 + $0x30] sm:$0xff] %v592
          %609 = vst [vmem:[%s286 + $0x38] sm:$0xff] %v593
          %610 = vst [vmem:[%s286 + $0x40] sm:$0xff] %v594
          %611 = vst [vmem:[%s286 + $0x48] sm:$0xff] %v595
          %612 = vst [vmem:[%s286 + $0x50] sm:$0xff] %v596
          %613 = vst [vmem:[%s286 + $0x58] sm:$0xff] %v597
          %614 = vst [vmem:[%s286 + $0x60] sm:$0xff] %v598
          %615 = vst [vmem:[%s286 + $0x68] sm:$0xff] %v599
          %616 = vst [vmem:[%s286 + $0x70] sm:$0xff] %v600
          %617 = vst [vmem:[%s286 + $0x78] sm:$0xff] %v601
        $region77: #{hypergraph_attention_isomorphism.3} parent=64 // pred_fallthru
          _
        %s618 = smul.u32 16, %s17
        %p619 = scmp.lt.s32.totalorder %s618, 47
        %s620 = scalar_select %p619, %s618, 47
        %s621 = smul.addr %s620, 8
        %s622 = scalar_lea.vmem %s2, %s621
        // Predicated region
        $region78: #{hypergraph_attention_isomorphism.3} parent=64 // pred_check
          %p623 = pneg %p97
        $region79: #{hypergraph_attention_isomorphism.3} parent=64 // pred_check_branch
          %625 = sbr.rel (%p623) target = $region81
        $region80: #{hypergraph_attention_isomorphism.3} parent=64 // pred_region
          %s626 = smul.u32 16, %s17
        $region81: #{hypergraph_attention_isomorphism.3} parent=64 // pred_fallthru
          _
      $region65: #{hypergraph_attention_isomorphism.3} parent=5 // pred_fallthru
        _
      %p627 = scmp.le.s32.totalorder 2, %s8
      // Predicated region
      $region82: #{hypergraph_attention_isomorphism.3} parent=5 // pred_check
        %p628 = pneg %p627
      $region83: #{hypergraph_attention_isomorphism.3} parent=5 // pred_check_branch
        %630 = sbr.rel (%p628) target = $region85
      $region84: #{hypergraph_attention_isomorphism.3} parent=5 // pred_region
        %s631 = ssub.s32 %s8, 2
        // Predicated region
        $region86: #{hypergraph_attention_isomorphism.3} parent=84 // pred_check
          %p632 = pneg %p103
        $region87: #{hypergraph_attention_isomorphism.3} parent=84 // pred_check_branch
          %634 = sbr.rel (%p632) target = $region89
        $region88: #{hypergraph_attention_isomorphism.3} parent=84 // pred_region
          %s635 = smul.u32 16, %s19
          %p636 = scmp.lt.s32.totalorder %s635, 47
          %s637 = scalar_select %p636, %s635, 47
          %s638 = smul.addr %s637, 8
          %s639 = scalar_lea.vmem %s2, %s638
        $region89: #{hypergraph_attention_isomorphism.3} parent=84 // pred_fallthru
          _
      $region85: #{hypergraph_attention_isomorphism.3} parent=5 // pred_fallthru
        _
    $region6: #{hypergraph_attention_isomorphism.3} parent=1 // loop_footer
      %s12 = sadd.s32 1, %s8
    $region7: #{hypergraph_attention_isomorphism.3} parent=1 // loop_footer_branch
      %7 = sbr.rel target = $region3
    $region8: #{hypergraph_attention_isomorphism.3} parent=1 // loop_exit
      _

// kernel: hypergraph_attention_isomorphism.2
$region0: #{hypergraph_attention_isomorphism.2}
  #allocation0 [shape = 'u32[]', space=smem, size = 0x4, offset = 0x4, fixed_abs, tag = 'smem constant byte address 0x4 - core index']
  #allocation1 [shape = 'u32[144,128]{1,0:T(1,128)}', space=vmem, size = 0x12000, scoped, tag = 'internal scratch']
  #allocation2 [shape = 'f32[128,128]{1,0:T(8,128)}', space=vmem, size = 0x10000, scoped, tag = 'scratch operand']
  #allocation3 [shape = 'f32[1,1]{1,0:T(1,128)S(6)}', space=smem, size = 0x200, scoped, tag = 'scoped memory for hypergraph_attention_isomorphism.2']
  %s0 = inlined_call_operand.<no memory space> [shape: f32[1,1], index: 0, kind: input, shape index: {}]
  %s1 = inlined_call_operand.vmem [shape: bf16[384,384], index: 1, kind: input, shape index: {}]
  %s2 = inlined_call_operand.vmem [shape: bf16[384,128], index: 2, kind: input, shape index: {}]
  %s3 = inlined_call_operand.vmem [shape: bf16[384,128], index: 3, kind: input, shape index: {}]
  %s4 = inlined_call_operand.vmem [shape: bf16[128,128], index: 4, kind: input, shape index: {}]
  %s5 = inlined_call_operand.vmem [shape: bf16[384,128], index: 5, kind: output, shape index: {}]
  %s6 = sld [smem:[#allocation0]]
  $region102: #{hypergraph_attention_isomorphism.2} parent=0
    _
  %s8 = ssub.s32 1, %s6
  %s9 = scalar_select 0, %s8, %s6
  %10 = sst [smem:[#allocation3]] %s0
  $region1: #{hypergraph_attention_isomorphism.2} parent=0
    #allocation4 [shape = 'u8[65536]{0}', space=vmem, size = 0x10000, scoped, tag = 'input window, operand 1']
    loop: start=0, step=1, limit=11
    $region2: #{hypergraph_attention_isomorphism.2} parent=1 // loop_pre_header
      _
    $region3: #{hypergraph_attention_isomorphism.2} parent=1 // loop_header
      %s12 = sphi 0, %s16
      %p13 = scmp.ge.s32.totalorder %s12, 11
      %s19 = sphi 0, %s31
      %s20 = sphi 0, %s27
      %s21 = sphi 0, %s19
      %s22 = sphi 0, %s20
      %s23 = sphi 0, %s21
      %s24 = sphi 0, %s22
      %s32 = sphi 0, %s32
      %s34 = sphi 0, %s32
      %s35 = sphi 0, %s34
      %s49 = sphi 0, %s35
      %s57 = sphi 0, %s59
      %s60 = sphi 0, %s57
      %s61 = sphi 0, %s60
      %s77 = sphi 0, %s61
      %s83 = sphi 0, %s85
      %s86 = sphi 0, %s83
      %s87 = sphi 0, %s86
      %s103 = sphi 0, %s87
      %s109 = sphi 0, %s111
      %s112 = sphi 0, %s109
      %s113 = sphi 0, %s112
      %s129 = sphi 0, %s113
      %s133 = sphi 0, %s133
      %s135 = sphi 0, %s133
      %s136 = sphi 0, %s135
      %s150 = sphi 0, %s136
      %s156 = sphi 0, %s158
      %s159 = sphi 0, %s156
      %s160 = sphi 0, %s159
      %s176 = sphi 0, %s160
    $region4: #{hypergraph_attention_isomorphism.2} parent=1 // loop_header_branch
      %15 = sbr.rel (%p13) target = $region8
    $region5: #{hypergraph_attention_isomorphism.2} parent=1 // loop_body
      %s17 = ssub.s32 %s12, 1
      %s18 = ssub.s32 %s12, 2
      %s25 = sadd.s32 1, %s20
      %p26 = scmp.ge.s32.totalorder %s25, 3
      %s27 = scalar_select %p26, 0, %s25
      %s28 = sadd.s32 1, %s19
      %s29 = scalar_select %p26, %s28, %s19
      %p30 = scmp.ge.s32.totalorder %s29, 3
      %s31 = scalar_select %p30, 0, %s29
      %s33 = sadd.s32 %s32, 1
      %p36 = scmp.eq.s32.totalorder %s12, 8
      %p37 = scmp.ne.s32.totalorder %s32, %s34
      %p38 = scmp.eq.s32.totalorder %s12, 0
      %p39 = por %p37, %p38
      %p40 = scmp.ne.s32.totalorder %s32, %s34
      %p41 = scmp.eq.s32.totalorder %s17, 8
      %p42 = por %p40, %p41
      %p43 = scmp.ne.s32.totalorder %s34, %s35
      %p44 = scmp.eq.s32.totalorder %s17, 0
      %p45 = por %p43, %p44
      %p46 = scmp.ne.s32.totalorder %s34, %s35
      %p47 = scmp.eq.s32.totalorder %s18, 8
      %p48 = por %p46, %p47
      %p50 = scmp.ne.s32.totalorder %s35, %s49
      %p51 = scmp.eq.s32.totalorder %s18, 0
      %p52 = por %p50, %p51
      %s53 = ssub.s32 %s19, %s31
      %s54 = ssub.s32 %s20, %s27
      %s55 = sor.u32 %s53, %s54
      %p56 = scmp.eq.s32.totalorder %s55, 0
      %s58 = sadd.s32 %s57, 1
      %s59 = scalar_select %p56, %s57, %s58
      %p62 = pneg %p56
      %p63 = scmp.eq.s32.totalorder %s12, 8
      %p64 = por %p62, %p63
      %p65 = scmp.ne.s32.totalorder %s57, %s60
      %p66 = scmp.eq.s32.totalorder %s12, 0
      %p67 = por %p65, %p66
      %p68 = scmp.ne.s32.totalorder %s57, %s60
      %p69 = scmp.eq.s32.totalorder %s17, 8
      %p70 = por %p68, %p69
      %p71 = scmp.ne.s32.totalorder %s60, %s61
      %p72 = scmp.eq.s32.totalorder %s17, 0
      %p73 = por %p71, %p72
      %p74 = scmp.ne.s32.totalorder %s60, %s61
      %p75 = scmp.eq.s32.totalorder %s18, 8
      %p76 = por %p74, %p75
      %p78 = scmp.ne.s32.totalorder %s61, %s77
      %p79 = scmp.eq.s32.totalorder %s18, 0
      %p80 = por %p78, %p79
      %s81 = ssub.s32 %s20, %s27
      %p82 = scmp.eq.s32.totalorder %s81, 0
      %s84 = sadd.s32 %s83, 1
      %s85 = scalar_select %p82, %s83, %s84
      %p88 = pneg %p82
      %p89 = scmp.eq.s32.totalorder %s12, 8
      %p90 = por %p88, %p89
      %p91 = scmp.ne.s32.totalorder %s83, %s86
      %p92 = scmp.eq.s32.totalorder %s12, 0
      %p93 = por %p91, %p92
      %p94 = scmp.ne.s32.totalorder %s83, %s86
      %p95 = scmp.eq.s32.totalorder %s17, 8
      %p96 = por %p94, %p95
      %p97 = scmp.ne.s32.totalorder %s86, %s87
      %p98 = scmp.eq.s32.totalorder %s17, 0
      %p99 = por %p97, %p98
      %p100 = scmp.ne.s32.totalorder %s86, %s87
      %p101 = scmp.eq.s32.totalorder %s18, 8
      %p102 = por %p100, %p101
      %p104 = scmp.ne.s32.totalorder %s87, %s103
      %p105 = scmp.eq.s32.totalorder %s18, 0
      %p106 = por %p104, %p105
      %s107 = ssub.s32 %s19, %s31
      %p108 = scmp.eq.s32.totalorder %s107, 0
      %s110 = sadd.s32 %s109, 1
      %s111 = scalar_select %p108, %s109, %s110
      %p114 = pneg %p108
      %p115 = scmp.eq.s32.totalorder %s12, 8
      %p116 = por %p114, %p115
      %p117 = scmp.ne.s32.totalorder %s109, %s112
      %p118 = scmp.eq.s32.totalorder %s12, 0
      %p119 = por %p117, %p118
      %p120 = scmp.ne.s32.totalorder %s109, %s112
      %p121 = scmp.eq.s32.totalorder %s17, 8
      %p122 = por %p120, %p121
      %p123 = scmp.ne.s32.totalorder %s112, %s113
      %p124 = scmp.eq.s32.totalorder %s17, 0
      %p125 = por %p123, %p124
      %p126 = scmp.ne.s32.totalorder %s112, %s113
      %p127 = scmp.eq.s32.totalorder %s18, 8
      %p128 = por %p126, %p127
      %p130 = scmp.ne.s32.totalorder %s113, %s129
      %p131 = scmp.eq.s32.totalorder %s18, 0
      %p132 = por %p130, %p131
      %s134 = sadd.s32 %s133, 1
      %p137 = scmp.eq.s32.totalorder %s12, 8
      %p138 = scmp.ne.s32.totalorder %s133, %s135
      %p139 = scmp.eq.s32.totalorder %s12, 0
      %p140 = por %p138, %p139
      %p141 = scmp.ne.s32.totalorder %s133, %s135
      %p142 = scmp.eq.s32.totalorder %s17, 8
      %p143 = por %p141, %p142
      %p144 = scmp.ne.s32.totalorder %s135, %s136
      %p145 = scmp.eq.s32.totalorder %s17, 0
      %p146 = por %p144, %p145
      %p147 = scmp.ne.s32.totalorder %s135, %s136
      %p148 = scmp.eq.s32.totalorder %s18, 8
      %p149 = por %p147, %p148
      %p151 = scmp.ne.s32.totalorder %s136, %s150
      %p152 = scmp.eq.s32.totalorder %s18, 0
      %p153 = por %p151, %p152
      %s154 = ssub.s32 %s19, %s31
      %p155 = scmp.eq.s32.totalorder %s154, 0
      %s157 = sadd.s32 %s156, 1
      %s158 = scalar_select %p155, %s156, %s157
      %p161 = pneg %p155
      %p162 = scmp.eq.s32.totalorder %s12, 8
      %p163 = por %p161, %p162
      %p164 = scmp.ne.s32.totalorder %s156, %s159
      %p165 = scmp.eq.s32.totalorder %s12, 0
      %p166 = por %p164, %p165
      %p167 = scmp.ne.s32.totalorder %s156, %s159
      %p168 = scmp.eq.s32.totalorder %s17, 8
      %p169 = por %p167, %p168
      %p170 = scmp.ne.s32.totalorder %s159, %s160
      %p171 = scmp.eq.s32.totalorder %s17, 0
      %p172 = por %p170, %p171
      %p173 = scmp.ne.s32.totalorder %s159, %s160
      %p174 = scmp.eq.s32.totalorder %s18, 8
      %p175 = por %p173, %p174
      %p177 = scmp.ne.s32.totalorder %s160, %s176
      %p178 = scmp.eq.s32.totalorder %s18, 0
      %p179 = por %p177, %p178
      %p180 = scmp.le.s32.totalorder 1, %s12
      %p181 = scmp.lt.s32.totalorder %s12, 10
      %p182 = pnand %p180, %p181
      %p183 = pneg %p182
      // Predicated region
      $region9: #{hypergraph_attention_isomorphism.2} parent=5 // pred_check
        _
      $region10: #{hypergraph_attention_isomorphism.2} parent=5 // pred_check_branch
        %185 = sbr.rel (%p182) target = $region12
      $region11: #{hypergraph_attention_isomorphism.2} parent=5 // pred_region
        %s186 = ssub.s32 %s12, 1
        // Predicated region
        $region13: #{hypergraph_attention_isomorphism.2} parent=11 // pred_check
          %p187 = pneg %p45
        $region14: #{hypergraph_attention_isomorphism.2} parent=11 // pred_check_branch
          %189 = sbr.rel (%p187) target = $region16
        $region15: #{hypergraph_attention_isomorphism.2} parent=11 // pred_region
          _
        $region16: #{hypergraph_attention_isomorphism.2} parent=11 // pred_fallthru
          _
        // Predicated region
        $region17: #{hypergraph_attention_isomorphism.2} parent=11 // pred_check
          %p190 = pneg %p125
        $region18: #{hypergraph_attention_isomorphism.2} parent=11 // pred_check_branch
          %192 = sbr.rel (%p190) target = $region20
        $region19: #{hypergraph_attention_isomorphism.2} parent=11 // pred_region
          %s193 = smul.u32 16, %s21
          %p194 = scmp.lt.s32.totalorder %s193, 47
          %s195 = scalar_select %p194, %s193, 47
          %s196 = smul.addr %s195, 4
          %s197 = scalar_lea.vmem %s3, %s196
          %s198 = smul.u32 16, %s21
        $region20: #{hypergraph_attention_isomorphism.2} parent=11 // pred_fallthru
          _
        // Predicated region
        $region21: #{hypergraph_attention_isomorphism.2} parent=11 // pred_check
          %p199 = pneg %p146
        $region22: #{hypergraph_attention_isomorphism.2} parent=11 // pred_check_branch
          %201 = sbr.rel (%p199) target = $region24
        $region23: #{hypergraph_attention_isomorphism.2} parent=11 // pred_region
          _
        $region24: #{hypergraph_attention_isomorphism.2} parent=11 // pred_fallthru
          _
      $region12: #{hypergraph_attention_isomorphism.2} parent=5 // pred_fallthru
        _
      %p202 = scmp.lt.s32.totalorder %s12, 9
      // Predicated region
      $region25: #{hypergraph_attention_isomorphism.2} parent=5 // pred_check
        %p203 = pneg %p202
      $region26: #{hypergraph_attention_isomorphism.2} parent=5 // pred_check_branch
        %205 = sbr.rel (%p203) target = $region28
      $region27: #{hypergraph_attention_isomorphism.2} parent=5 // pred_region
        // Predicated region
        $region29: #{hypergraph_attention_isomorphism.2} parent=27 // pred_check
          %p206 = pneg %p67
        $region30: #{hypergraph_attention_isomorphism.2} parent=27 // pred_check_branch
          %208 = sbr.rel (%p206) target = $region32
        $region31: #{hypergraph_attention_isomorphism.2} parent=27 // pred_region
          %s209 = sand.u32 %s57, 1
          %s210 = sand.u32 %s57, 1
          %s211 = smul.addr %s210, 64
          %s212 = scalar_lea.vmem [#allocation4], %s211
          %s213 = smul.u32 16, %s19
          %s214 = smul.addr %s213, 3
          %s215 = sadd.s32 %s20, %s214
          %s216 = smul.addr %s215, 4
          %s217 = scalar_lea.vmem %s1, %s216
          // Predicated region
          $region33: #{hypergraph_attention_isomorphism.2} parent=31 // pred_check
            _
          $region34: #{hypergraph_attention_isomorphism.2} parent=31 // pred_check_branch
            %219 = sbr.rel (0) target = $region36
          $region35: #{hypergraph_attention_isomorphism.2} parent=31 // pred_region
            // Predicated region
            $region37: #{hypergraph_attention_isomorphism.2} parent=35 // pred_check
              _
            $region38: #{hypergraph_attention_isomorphism.2} parent=35 // pred_check_branch
              %221 = sbr.rel target = $region40
            $region39: #{hypergraph_attention_isomorphism.2} parent=35 // pred_region
              // Predicated region
              $region52: #{hypergraph_attention_isomorphism.2} parent=39 // pred_check
                _
              $region53: #{hypergraph_attention_isomorphism.2} parent=39 // pred_check_branch
                %267 = sbr.rel (0) target = $region55
              $region54: #{hypergraph_attention_isomorphism.2} parent=39 // pred_region
                loop: start=0, step=1, limit=1
                $region56: #{hypergraph_attention_isomorphism.2} parent=54 // loop_pre_header
                  _
                $region57: #{hypergraph_attention_isomorphism.2} parent=54 // loop_header
                  %s269 = sphi 0, %s273
                  %p270 = scmp.ge.s32.totalorder %s269, 1
                  %s274 = sphi %s217, %s217
                  %s275 = sphi %s212, %s212
                $region58: #{hypergraph_attention_isomorphism.2} parent=54 // loop_header_branch
                  %272 = sbr.rel (%p270) target = $region62
                $region59: #{hypergraph_attention_isomorphism.2} parent=54 // loop_body
                  _
                $region60: #{hypergraph_attention_isomorphism.2} parent=54 // loop_footer
                  %s273 = sadd.s32 1, %s269
                $region61: #{hypergraph_attention_isomorphism.2} parent=54 // loop_footer_branch
                  %268 = sbr.rel target = $region57
                $region62: #{hypergraph_attention_isomorphism.2} parent=54 // loop_exit
                  _
                %s277 = ssub.s32 16, 1
                loop: start=0, step=1, limit=1
                $region63: #{hypergraph_attention_isomorphism.2} parent=54 // loop_pre_header
                  _
                $region64: #{hypergraph_attention_isomorphism.2} parent=54 // loop_header
                  %s279 = sphi 0, %s283
                  %p280 = scmp.ge.s32.totalorder %s279, 1
                  %s284 = sphi %s217, %s217
                  %s285 = sphi %s212, %s212
                $region65: #{hypergraph_attention_isomorphism.2} parent=54 // loop_header_branch
                  %282 = sbr.rel (%p280) target = $region69
                $region66: #{hypergraph_attention_isomorphism.2} parent=54 // loop_body
                  %v286 = vld [vmem:[%s284] sm:%s277]
                  %287 = vst [vmem:[%s285] sm:%s277] %v286
                  %v288 = vld [vmem:[%s284 + $0xc] sm:%s277]
                  %289 = vst [vmem:[%s285 + $0x4] sm:%s277] %v288
                  %v290 = vld [vmem:[%s284 + $0x18] sm:%s277]
                  %291 = vst [vmem:[%s285 + $0x8] sm:%s277] %v290
                  %v292 = vld [vmem:[%s284 + $0x24] sm:%s277]
                  %293 = vst [vmem:[%s285 + $0xc] sm:%s277] %v292
                  %v294 = vld [vmem:[%s284 + $0x30] sm:%s277]
                  %295 = vst [vmem:[%s285 + $0x10] sm:%s277] %v294
                  %v296 = vld [vmem:[%s284 + $0x3c] sm:%s277]
                  %297 = vst [vmem:[%s285 + $0x14] sm:%s277] %v296
                  %v298 = vld [vmem:[%s284 + $0x48] sm:%s277]
                  %299 = vst [vmem:[%s285 + $0x18] sm:%s277] %v298
                  %v300 = vld [vmem:[%s284 + $0x54] sm:%s277]
                  %301 = vst [vmem:[%s285 + $0x1c] sm:%s277] %v300
                  %v302 = vld [vmem:[%s284 + $0x60] sm:%s277]
                  %303 = vst [vmem:[%s285 + $0x20] sm:%s277] %v302
                  %v304 = vld [vmem:[%s284 + $0x6c] sm:%s277]
                  %305 = vst [vmem:[%s285 + $0x24] sm:%s277] %v304
                  %v306 = vld [vmem:[%s284 + $0x78] sm:%s277]
                  %307 = vst [vmem:[%s285 + $0x28] sm:%s277] %v306
                  %v308 = vld [vmem:[%s284 + $0x84] sm:%s277]
                  %309 = vst [vmem:[%s285 + $0x2c] sm:%s277] %v308
                  %v310 = vld [vmem:[%s284 + $0x90] sm:%s277]
                  %311 = vst [vmem:[%s285 + $0x30] sm:%s277] %v310
                  %v312 = vld [vmem:[%s284 + $0x9c] sm:%s277]
                  %313 = vst [vmem:[%s285 + $0x34] sm:%s277] %v312
                  %v314 = vld [vmem:[%s284 + $0xa8] sm:%s277]
                  %315 = vst [vmem:[%s285 + $0x38] sm:%s277] %v314
                  %v316 = vld [vmem:[%s284 + $0xb4] sm:%s277]
                  %317 = vst [vmem:[%s285 + $0x3c] sm:%s277] %v316
                $region67: #{hypergraph_attention_isomorphism.2} parent=54 // loop_footer
                  %s283 = sadd.s32 1, %s279
                $region68: #{hypergraph_attention_isomorphism.2} parent=54 // loop_footer_branch
                  %278 = sbr.rel target = $region64
                $region69: #{hypergraph_attention_isomorphism.2} parent=54 // loop_exit
                  _
              $region55: #{hypergraph_attention_isomorphism.2} parent=39 // pred_fallthru
                _
            $region40: #{hypergraph_attention_isomorphism.2} parent=35 // pred_fallthru
              _
            // Predicated region
            $region41: #{hypergraph_attention_isomorphism.2} parent=35 // pred_check
              _
            $region42: #{hypergraph_attention_isomorphism.2} parent=35 // pred_check_branch
              %223 = sbr.rel (0) target = $region44
            $region43: #{hypergraph_attention_isomorphism.2} parent=35 // pred_region
              %s225 = ssub.s32 16, 1
              loop: start=0, step=1, limit=1
              $region45: #{hypergraph_attention_isomorphism.2} parent=43 // loop_pre_header
                _
              $region46: #{hypergraph_attention_isomorphism.2} parent=43 // loop_header
                %s227 = sphi 0, %s231
                %p228 = scmp.ge.s32.totalorder %s227, 1
                %s232 = sphi %s217, %s217
                %s233 = sphi %s212, %s212
              $region47: #{hypergraph_attention_isomorphism.2} parent=43 // loop_header_branch
                %230 = sbr.rel (%p228) target = $region51
              $region48: #{hypergraph_attention_isomorphism.2} parent=43 // loop_body
                %v234 = vld [vmem:[%s232] sm:%s225]
                %235 = vst [vmem:[%s233] sm:%s225] %v234
                %v236 = vld [vmem:[%s232 + $0xc] sm:%s225]
                %237 = vst [vmem:[%s233 + $0x4] sm:%s225] %v236
                %v238 = vld [vmem:[%s232 + $0x18] sm:%s225]
                %239 = vst [vmem:[%s233 + $0x8] sm:%s225] %v238
                %v240 = vld [vmem:[%s232 + $0x24] sm:%s225]
                %241 = vst [vmem:[%s233 + $0xc] sm:%s225] %v240
                %v242 = vld [vmem:[%s232 + $0x30] sm:%s225]
                %243 = vst [vmem:[%s233 + $0x10] sm:%s225] %v242
                %v244 = vld [vmem:[%s232 + $0x3c] sm:%s225]
                %245 = vst [vmem:[%s233 + $0x14] sm:%s225] %v244
                %v246 = vld [vmem:[%s232 + $0x48] sm:%s225]
                %247 = vst [vmem:[%s233 + $0x18] sm:%s225] %v246
                %v248 = vld [vmem:[%s232 + $0x54] sm:%s225]
                %249 = vst [vmem:[%s233 + $0x1c] sm:%s225] %v248
                %v250 = vld [vmem:[%s232 + $0x60] sm:%s225]
                %251 = vst [vmem:[%s233 + $0x20] sm:%s225] %v250
                %v252 = vld [vmem:[%s232 + $0x6c] sm:%s225]
                %253 = vst [vmem:[%s233 + $0x24] sm:%s225] %v252
                %v254 = vld [vmem:[%s232 + $0x78] sm:%s225]
                %255 = vst [vmem:[%s233 + $0x28] sm:%s225] %v254
                %v256 = vld [vmem:[%s232 + $0x84] sm:%s225]
                %257 = vst [vmem:[%s233 + $0x2c] sm:%s225] %v256
                %v258 = vld [vmem:[%s232 + $0x90] sm:%s225]
                %259 = vst [vmem:[%s233 + $0x30] sm:%s225] %v258
                %v260 = vld [vmem:[%s232 + $0x9c] sm:%s225]
                %261 = vst [vmem:[%s233 + $0x34] sm:%s225] %v260
                %v262 = vld [vmem:[%s232 + $0xa8] sm:%s225]
                %263 = vst [vmem:[%s233 + $0x38] sm:%s225] %v262
                %v264 = vld [vmem:[%s232 + $0xb4] sm:%s225]
                %265 = vst [vmem:[%s233 + $0x3c] sm:%s225] %v264
              $region49: #{hypergraph_attention_isomorphism.2} parent=43 // loop_footer
                %s231 = sadd.s32 1, %s227
              $region50: #{hypergraph_attention_isomorphism.2} parent=43 // loop_footer_branch
                %226 = sbr.rel target = $region46
              $region51: #{hypergraph_attention_isomorphism.2} parent=43 // loop_exit
                _
            $region44: #{hypergraph_attention_isomorphism.2} parent=35 // pred_fallthru
              _
          $region36: #{hypergraph_attention_isomorphism.2} parent=31 // pred_fallthru
            _
          %318 = vnop
        $region32: #{hypergraph_attention_isomorphism.2} parent=27 // pred_fallthru
          _
        // Predicated region
        $region70: #{hypergraph_attention_isomorphism.2} parent=27 // pred_check
          %p319 = pneg %p93
        $region71: #{hypergraph_attention_isomorphism.2} parent=27 // pred_check_branch
          %321 = sbr.rel (%p319) target = $region73
        $region72: #{hypergraph_attention_isomorphism.2} parent=27 // pred_region
          %s322 = smul.u32 16, %s20
          %p323 = scmp.lt.s32.totalorder %s322, 47
          %s324 = scalar_select %p323, %s322, 47
          %s325 = smul.addr %s324, 4
          %s326 = scalar_lea.vmem %s2, %s325
          %s327 = smul.u32 16, %s20
        $region73: #{hypergraph_attention_isomorphism.2} parent=27 // pred_fallthru
          _
      $region28: #{hypergraph_attention_isomorphism.2} parent=5 // pred_fallthru
        _
      %p328 = scmp.le.s32.totalorder 1, %s12
      %p329 = scmp.lt.s32.totalorder %s12, 10
      %p330 = pnand %p328, %p329
      %p331 = pneg %p330
      // Predicated region
      $region74: #{hypergraph_attention_isomorphism.2} parent=5 // pred_check
        _
      $region75: #{hypergraph_attention_isomorphism.2} parent=5 // pred_check_branch
        %333 = sbr.rel (%p330) target = $region77
      $region76: #{hypergraph_attention_isomorphism.2} parent=5 // pred_region
        %s334 = ssub.s32 %s12, 1
        %s335 = sand.u32 %s60, 1
        %s336 = sand.u32 %s60, 1
        %s337 = smul.addr %s336, 64
        %s338 = scalar_lea.vmem [#allocation4], %s337
        // Predicated region
        $region78: #{hypergraph_attention_isomorphism.2} parent=76 // pred_check
          %p339 = pneg %p73
        $region79: #{hypergraph_attention_isomorphism.2} parent=76 // pred_check_branch
          %341 = sbr.rel (%p339) target = $region81
        $region80: #{hypergraph_attention_isomorphism.2} parent=76 // pred_region
          _
        $region81: #{hypergraph_attention_isomorphism.2} parent=76 // pred_fallthru
          _
        %p342 = pneg %p45
        %p343 = pneg %p42
        %s344 = sand.u32 %s60, 1
        %s345 = sand.u32 %s60, 1
        %s346 = smul.addr %s345, 64
        %s347 = scalar_lea.vmem [#allocation4], %s346
        %p348 = pneg %p73
        %p349 = pneg %p70
        %s350 = smul.u32 16, %s22
        %p351 = scmp.lt.s32.totalorder %s350, 47
        %s352 = scalar_select %p351, %s350, 47
        %s353 = smul.addr %s352, 4
        %s354 = scalar_lea.vmem %s2, %s353
        %p355 = pneg %p99
        %p356 = pneg %p96
        %s357 = smul.u32 16, %s21
        %p358 = scmp.lt.s32.totalorder %s357, 47
        %s359 = scalar_select %p358, %s357, 47
        %s360 = smul.addr %s359, 4
        %s361 = scalar_lea.vmem %s3, %s360
        %p362 = pneg %p125
        %p363 = pneg %p122
        %p364 = pneg %p146
        %p365 = pneg %p143
        %p366 = pneg %p172
        %p367 = pneg %p169
        %s368 = smul.u32 16, %s21
        %p369 = scmp.lt.s32.totalorder %s368, 47
        %s370 = scalar_select %p369, %s368, 47
        %s371 = smul.addr %s370, 4
        %s372 = scalar_lea.vmem %s5, %s371
        %s373 = smul.u32 16, %s21
        %s374 = smul.u32 16, %s22
        %p375 = scmp.lt.s32.totalorder %s374, 47
        %s376 = scalar_select %p375, %s374, 47
        %s377 = smul.addr %s376, 4
        %s378 = scalar_lea.vmem %s2, %s377
        %s379 = smul.u32 16, %s22
        %s380 = smul.u32 16, %s21
        %p381 = scmp.lt.s32.totalorder %s380, 47
        %s382 = scalar_select %p381, %s380, 47
        %s383 = smul.addr %s382, 4
        %s384 = scalar_lea.vmem %s3, %s383
        %s385 = smul.u32 16, %s21
        %s386 = smul.u32 16, %s21
        %p387 = scmp.lt.s32.totalorder %s386, 47
        %s388 = scalar_select %p387, %s386, 47
        %s389 = smul.addr %s388, 4
        %s390 = scalar_lea.vmem %s5, %s389
        %s391 = smul.u32 16, %s21
        %p393 = scmp.eq.s32.totalorder %s22, 0
        // Predicated region
        $region82: #{hypergraph_attention_isomorphism.2} parent=76 // pred_check
          %p394 = pneg %p393
        $region83: #{hypergraph_attention_isomorphism.2} parent=76 // pred_check_branch
          %396 = sbr.rel (%p394) target = $region85
        $region84: #{hypergraph_attention_isomorphism.2} parent=76 // pred_region
          %s397 = sld [smem:[#allocation3]]
          %v398 = vld [vmem:[%s384] sm:$0xf]
          %v399 = vld [vmem:[%s384 + $0x4] sm:$0xf]
          %v400 = vld [vmem:[%s384 + $0x8] sm:$0xf]
          %v401 = vld [vmem:[%s384 + $0xc] sm:$0xf]
          %v402 = vld [vmem:[%s384 + $0x10] sm:$0xf]
          %v403 = vld [vmem:[%s384 + $0x14] sm:$0xf]
          %v404 = vld [vmem:[%s384 + $0x18] sm:$0xf]
          %v405 = vld [vmem:[%s384 + $0x1c] sm:$0xf]
          %v406 = vld [vmem:[%s384 + $0x20] sm:$0xf]
          %v407 = vld [vmem:[%s384 + $0x24] sm:$0xf]
          %v408 = vld [vmem:[%s384 + $0x28] sm:$0xf]
          %v409 = vld [vmem:[%s384 + $0x2c] sm:$0xf]
          %v410 = vld [vmem:[%s384 + $0x30] sm:$0xf]
          %v411 = vld [vmem:[%s384 + $0x34] sm:$0xf]
          %v412 = vld [vmem:[%s384 + $0x38] sm:$0xf]
          %v413 = vld [vmem:[%s384 + $0x3c] sm:$0xf]
          %v414 = vunpack.c.l.bf16 %v398
          %v415 = vunpack.c.l.bf16 %v399
          %v416 = vunpack.c.l.bf16 %v400
          %v417 = vunpack.c.l.bf16 %v401
          %v418 = vunpack.c.l.bf16 %v402
          %v419 = vunpack.c.l.bf16 %v403
          %v420 = vunpack.c.l.bf16 %v404
          %v421 = vunpack.c.l.bf16 %v405
          %v422 = vunpack.c.l.bf16 %v406
          %v423 = vunpack.c.l.bf16 %v407
          %v424 = vunpack.c.l.bf16 %v408
          %v425 = vunpack.c.l.bf16 %v409
          %v426 = vunpack.c.l.bf16 %v410
          %v427 = vunpack.c.l.bf16 %v411
          %v428 = vunpack.c.l.bf16 %v412
          %v429 = vunpack.c.l.bf16 %v413
          %v430 = vstv %s397
          %v431 = vmul.f32 %v430, %v414
          %v432 = vmul.f32 %v430, %v415
          %v433 = vmul.f32 %v430, %v416
          %v434 = vmul.f32 %v430, %v417
          %v435 = vmul.f32 %v430, %v418
          %v436 = vmul.f32 %v430, %v419
          %v437 = vmul.f32 %v430, %v420
          %v438 = vmul.f32 %v430, %v421
          %v439 = vmul.f32 %v430, %v422
          %v440 = vmul.f32 %v430, %v423
          %v441 = vmul.f32 %v430, %v424
          %v442 = vmul.f32 %v430, %v425
          %v443 = vmul.f32 %v430, %v426
          %v444 = vmul.f32 %v430, %v427
          %v445 = vmul.f32 %v430, %v428
          %v446 = vmul.f32 %v430, %v429
          %447 = vst [vmem:[#allocation2] sm:$0xff] %v431
          %448 = vst [vmem:[#allocation2 + $0x8] sm:$0xff] %v432
          %449 = vst [vmem:[#allocation2 + $0x10] sm:$0xff] %v433
          %450 = vst [vmem:[#allocation2 + $0x18] sm:$0xff] %v434
          %451 = vst [vmem:[#allocation2 + $0x20] sm:$0xff] %v435
          %452 = vst [vmem:[#allocation2 + $0x28] sm:$0xff] %v436
          %453 = vst [vmem:[#allocation2 + $0x30] sm:$0xff] %v437
          %454 = vst [vmem:[#allocation2 + $0x38] sm:$0xff] %v438
          %455 = vst [vmem:[#allocation2 + $0x40] sm:$0xff] %v439
          %456 = vst [vmem:[#allocation2 + $0x48] sm:$0xff] %v440
          %457 = vst [vmem:[#allocation2 + $0x50] sm:$0xff] %v441
          %458 = vst [vmem:[#allocation2 + $0x58] sm:$0xff] %v442
          %459 = vst [vmem:[#allocation2 + $0x60] sm:$0xff] %v443
          %460 = vst [vmem:[#allocation2 + $0x68] sm:$0xff] %v444
          %461 = vst [vmem:[#allocation2 + $0x70] sm:$0xff] %v445
          %462 = vst [vmem:[#allocation2 + $0x78] sm:$0xff] %v446
        $region85: #{hypergraph_attention_isomorphism.2} parent=76 // pred_fallthru
          _
        %v463 = vld [vmem:[#allocation2] sm:$0xff]
        %v464 = vld [vmem:[#allocation2 + $0x8] sm:$0xff]
        %v465 = vld [vmem:[#allocation2 + $0x10] sm:$0xff]
        %v466 = vld [vmem:[#allocation2 + $0x18] sm:$0xff]
        %v467 = vld [vmem:[#allocation2 + $0x20] sm:$0xff]
        %v468 = vld [vmem:[#allocation2 + $0x28] sm:$0xff]
        %v469 = vld [vmem:[#allocation2 + $0x30] sm:$0xff]
        %v470 = vld [vmem:[#allocation2 + $0x38] sm:$0xff]
        %v471 = vld [vmem:[#allocation2 + $0x40] sm:$0xff]
        %v472 = vld [vmem:[#allocation2 + $0x48] sm:$0xff]
        %v473 = vld [vmem:[#allocation2 + $0x50] sm:$0xff]
        %v474 = vld [vmem:[#allocation2 + $0x58] sm:$0xff]
        %v475 = vld [vmem:[#allocation2 + $0x60] sm:$0xff]
        %v476 = vld [vmem:[#allocation2 + $0x68] sm:$0xff]
        %v477 = vld [vmem:[#allocation2 + $0x70] sm:$0xff]
        %v478 = vld [vmem:[#allocation2 + $0x78] sm:$0xff]
        %v479 = vld [vmem:[%s338] sm:$0xf]
        %v480 = vld [vmem:[%s338 + $0x4] sm:$0xf]
        %v481 = vld [vmem:[%s338 + $0x8] sm:$0xf]
        %v482 = vld [vmem:[%s338 + $0xc] sm:$0xf]
        %v483 = vld [vmem:[%s338 + $0x10] sm:$0xf]
        %v484 = vld [vmem:[%s338 + $0x14] sm:$0xf]
        %v485 = vld [vmem:[%s338 + $0x18] sm:$0xf]
        %v486 = vld [vmem:[%s338 + $0x1c] sm:$0xf]
        %v487 = vld [vmem:[%s338 + $0x20] sm:$0xf]
        %v488 = vld [vmem:[%s338 + $0x24] sm:$0xf]
        %v489 = vld [vmem:[%s338 + $0x28] sm:$0xf]
        %v490 = vld [vmem:[%s338 + $0x2c] sm:$0xf]
        %v491 = vld [vmem:[%s338 + $0x30] sm:$0xf]
        %v492 = vld [vmem:[%s338 + $0x34] sm:$0xf]
        %v493 = vld [vmem:[%s338 + $0x38] sm:$0xf]
        %v494 = vld [vmem:[%s338 + $0x3c] sm:$0xf]
        %v495 = vld [vmem:[%s378] sm:$0xf]
        %v496 = vld [vmem:[%s378 + $0x4] sm:$0xf]
        %v497 = vld [vmem:[%s378 + $0x8] sm:$0xf]
        %v498 = vld [vmem:[%s378 + $0xc] sm:$0xf]
        %v499 = vld [vmem:[%s378 + $0x10] sm:$0xf]
        %v500 = vld [vmem:[%s378 + $0x14] sm:$0xf]
        %v501 = vld [vmem:[%s378 + $0x18] sm:$0xf]
        %v502 = vld [vmem:[%s378 + $0x1c] sm:$0xf]
        %v503 = vld [vmem:[%s378 + $0x20] sm:$0xf]
        %v504 = vld [vmem:[%s378 + $0x24] sm:$0xf]
        %v505 = vld [vmem:[%s378 + $0x28] sm:$0xf]
        %v506 = vld [vmem:[%s378 + $0x2c] sm:$0xf]
        %v507 = vld [vmem:[%s378 + $0x30] sm:$0xf]
        %v508 = vld [vmem:[%s378 + $0x34] sm:$0xf]
        %v509 = vld [vmem:[%s378 + $0x38] sm:$0xf]
        %v510 = vld [vmem:[%s378 + $0x3c] sm:$0xf]
        %v527 = vunpack.c.l.b16 %v479
        %v528 = vunpack.c.l.b16 %v480
        %v529 = vunpack.c.l.b16 %v481
        %v530 = vunpack.c.l.b16 %v482
        %v531 = vunpack.c.l.b16 %v483
        %v532 = vunpack.c.l.b16 %v484
        %v533 = vunpack.c.l.b16 %v485
        %v534 = vunpack.c.l.b16 %v486
        %v535 = vunpack.c.l.b16 %v487
        %v536 = vunpack.c.l.b16 %v488
        %v537 = vunpack.c.l.b16 %v489
        %v538 = vunpack.c.l.b16 %v490
        %v539 = vunpack.c.l.b16 %v491
        %v540 = vunpack.c.l.b16 %v492
        %v541 = vunpack.c.l.b16 %v493
        %v542 = vunpack.c.l.b16 %v494
        %v543 = vpack.c.b16 %v528, %v527
        %v544 = vpack.c.b16 %v530, %v529
        %v545 = vpack.c.b16 %v532, %v531
        %v546 = vpack.c.b16 %v534, %v533
        %v547 = vpack.c.b16 %v536, %v535
        %v548 = vpack.c.b16 %v538, %v537
        %v549 = vpack.c.b16 %v540, %v539
        %v550 = vpack.c.b16 %v542, %v541
        %v575 = vunpack.c.l.b16 %v495
        %v576 = vunpack.c.l.b16 %v496
        %v577 = vunpack.c.l.b16 %v497
        %v578 = vunpack.c.l.b16 %v498
        %v579 = vunpack.c.l.b16 %v499
        %v580 = vunpack.c.l.b16 %v500
        %v581 = vunpack.c.l.b16 %v501
        %v582 = vunpack.c.l.b16 %v502
        %v583 = vunpack.c.l.b16 %v503
        %v584 = vunpack.c.l.b16 %v504
        %v585 = vunpack.c.l.b16 %v505
        %v586 = vunpack.c.l.b16 %v506
        %v587 = vunpack.c.l.b16 %v507
        %v588 = vunpack.c.l.b16 %v508
        %v589 = vunpack.c.l.b16 %v509
        %v590 = vunpack.c.l.b16 %v510
        %v591 = vpack.c.b16 %v576, %v575
        %v592 = vpack.c.b16 %v578, %v577
        %v593 = vpack.c.b16 %v580, %v579
        %v594 = vpack.c.b16 %v582, %v581
        %v595 = vpack.c.b16 %v584, %v583
        %v596 = vpack.c.b16 %v586, %v585
        %v597 = vpack.c.b16 %v588, %v587
        %v598 = vpack.c.b16 %v590, %v589
        %607 = vmatprep.subr.bf16.mxu0 0
        %608 = vmatpush1.bf16.msra.mxu0 %v598
        %609 = vmatprep.subr.bf16.mxu0 0
        %610 = vmatpush1.bf16.msra.mxu0 %v597
        %611 = vmatprep.subr.bf16.mxu0 0
        %612 = vmatpush1.bf16.msra.mxu0 %v596
        %613 = vmatprep.subr.bf16.mxu0 0
        %614 = vmatpush1.bf16.msra.mxu0 %v595
        %615 = vmatprep.subr.bf16.mxu0 0
        %616 = vmatpush1.bf16.msra.mxu0 %v594
        %617 = vmatprep.subr.bf16.mxu0 0
        %618 = vmatpush1.bf16.msra.mxu0 %v593
        %619 = vmatprep.subr.bf16.mxu0 0
        %620 = vmatpush1.bf16.msra.mxu0 %v592
        %621 = vmatprep.subr.bf16.mxu0 0
        %622 = vmatpush1.bf16.msra.mxu0 %v591
        %623 = vmatprep.subr.bf16.mxu0 0
        %624 = vmatpush2.bf16.msra.mxu0 0
        %625 = vmatprep.subr.bf16.mxu0 0
        %626 = vmatpush2.bf16.msra.mxu0 0
        %627 = vmatprep.subr.bf16.mxu0 0
        %628 = vmatpush2.bf16.msra.mxu0 0
        %629 = vmatprep.subr.bf16.mxu0 0
        %630 = vmatpush2.bf16.msra.mxu0 0
        %631 = vmatprep.subr.bf16.mxu0 0
        %632 = vmatpush2.bf16.msra.mxu0 0
        %633 = vmatprep.subr.bf16.mxu0 0
        %634 = vmatpush2.bf16.msra.mxu0 0
        %635 = vmatprep.subr.bf16.mxu0 0
        %636 = vmatpush2.bf16.msra.mxu0 0
        %637 = vmatprep.subr.bf16.mxu0 0
        %638 = vmatpush2.bf16.msra.mxu0 0
        %639 = vmatprep.mubr.bf16.mxu0 0
        %640 = vmatmul.mubr.bf16.gmra.mxu0 %v543
        %v641 = vpop.f32.mrf.mxu0
        %v642 = vadd.f32 0.0, %v641
        %v643 = vpop.f32.mrf.mxu0
        %v644 = vpop.f32.mrf.mxu0
        %v645 = vadd.f32 0.0, %v644
        %v646 = vpop.f32.mrf.mxu0
        %647 = vmatprep.mubr.bf16.mxu0 0
        %648 = vmatmul.mubr.bf16.gmra.mxu0 %v544
        %v649 = vpop.f32.mrf.mxu0
        %v650 = vadd.f32 0.0, %v649
        %v651 = vpop.f32.mrf.mxu0
        %v652 = vpop.f32.mrf.mxu0
        %v653 = vadd.f32 0.0, %v652
        %v654 = vpop.f32.mrf.mxu0
        %655 = vmatprep.mubr.bf16.mxu0 0
        %656 = vmatmul.mubr.bf16.gmra.mxu0 %v545
        %v657 = vpop.f32.mrf.mxu0
        %v658 = vadd.f32 0.0, %v657
        %v659 = vpop.f32.mrf.mxu0
        %v660 = vpop.f32.mrf.mxu0
        %v661 = vadd.f32 0.0, %v660
        %v662 = vpop.f32.mrf.mxu0
        %663 = vmatprep.mubr.bf16.mxu0 0
        %664 = vmatmul.mubr.bf16.gmra.mxu0 %v546
        %v665 = vpop.f32.mrf.mxu0
        %v666 = vadd.f32 0.0, %v665
        %v667 = vpop.f32.mrf.mxu0
        %v668 = vpop.f32.mrf.mxu0
        %v669 = vadd.f32 0.0, %v668
        %v670 = vpop.f32.mrf.mxu0
        %671 = vmatprep.mubr.bf16.mxu0 0
        %672 = vmatmul.mubr.bf16.gmra.mxu0 %v547
        %v673 = vpop.f32.mrf.mxu0
        %v674 = vadd.f32 0.0, %v673
        %v675 = vpop.f32.mrf.mxu0
        %v676 = vpop.f32.mrf.mxu0
        %v677 = vadd.f32 0.0, %v676
        %v678 = vpop.f32.mrf.mxu0
        %679 = vmatprep.mubr.bf16.mxu0 0
        %680 = vmatmul.mubr.bf16.gmra.mxu0 %v548
        %v681 = vpop.f32.mrf.mxu0
        %v682 = vadd.f32 0.0, %v681
        %v683 = vpop.f32.mrf.mxu0
        %v684 = vpop.f32.mrf.mxu0
        %v685 = vadd.f32 0.0, %v684
        %v686 = vpop.f32.mrf.mxu0
        %687 = vmatprep.mubr.bf16.mxu0 0
        %688 = vmatmul.mubr.bf16.gmra.mxu0 %v549
        %v689 = vpop.f32.mrf.mxu0
        %v690 = vadd.f32 0.0, %v689
        %v691 = vpop.f32.mrf.mxu0
        %v692 = vpop.f32.mrf.mxu0
        %v693 = vadd.f32 0.0, %v692
        %v694 = vpop.f32.mrf.mxu0
        %695 = vmatprep.mubr.bf16.mxu0 0
        %696 = vmatmul.mubr.bf16.gmra.mxu0 %v550
        %v697 = vpop.f32.mrf.mxu0
        %v698 = vadd.f32 0.0, %v697
        %v699 = vpop.f32.mrf.mxu0
        %v700 = vpop.f32.mrf.mxu0
        %v701 = vadd.f32 0.0, %v700
        %v702 = vpop.f32.mrf.mxu0
        %703 = vdwg.mxu0
        %v704 = vadd.f32 %v463, %v642
        %v705 = vadd.f32 %v464, %v645
        %v706 = vadd.f32 %v465, %v650
        %v707 = vadd.f32 %v466, %v653
        %v708 = vadd.f32 %v467, %v658
        %v709 = vadd.f32 %v468, %v661
        %v710 = vadd.f32 %v469, %v666
        %v711 = vadd.f32 %v470, %v669
        %v712 = vadd.f32 %v471, %v674
        %v713 = vadd.f32 %v472, %v677
        %v714 = vadd.f32 %v473, %v682
        %v715 = vadd.f32 %v474, %v685
        %v716 = vadd.f32 %v475, %v690
        %v717 = vadd.f32 %v476, %v693
        %v718 = vadd.f32 %v477, %v698
        %v719 = vadd.f32 %v478, %v701
        %720 = vst [vmem:[#allocation2] sm:$0xff] %v704
        %721 = vst [vmem:[#allocation2 + $0x8] sm:$0xff] %v705
        %722 = vst [vmem:[#allocation2 + $0x10] sm:$0xff] %v706
        %723 = vst [vmem:[#allocation2 + $0x18] sm:$0xff] %v707
        %724 = vst [vmem:[#allocation2 + $0x20] sm:$0xff] %v708
        %725 = vst [vmem:[#allocation2 + $0x28] sm:$0xff] %v709
        %726 = vst [vmem:[#allocation2 + $0x30] sm:$0xff] %v710
        %727 = vst [vmem:[#allocation2 + $0x38] sm:$0xff] %v711
        %728 = vst [vmem:[#allocation2 + $0x40] sm:$0xff] %v712
        %729 = vst [vmem:[#allocation2 + $0x48] sm:$0xff] %v713
        %730 = vst [vmem:[#allocation2 + $0x50] sm:$0xff] %v714
        %731 = vst [vmem:[#allocation2 + $0x58] sm:$0xff] %v715
        %732 = vst [vmem:[#allocation2 + $0x60] sm:$0xff] %v716
        %733 = vst [vmem:[#allocation2 + $0x68] sm:$0xff] %v717
        %734 = vst [vmem:[#allocation2 + $0x70] sm:$0xff] %v718
        %735 = vst [vmem:[#allocation2 + $0x78] sm:$0xff] %v719
        %p736 = scmp.eq.s32.totalorder %s22, 2
        // Predicated region
        $region86: #{hypergraph_attention_isomorphism.2} parent=76 // pred_check
          %p737 = pneg %p736
        $region87: #{hypergraph_attention_isomorphism.2} parent=76 // pred_check_branch
          %739 = sbr.rel (%p737) target = $region89
        $region88: #{hypergraph_attention_isomorphism.2} parent=76 // pred_region
          %v740 = vld [vmem:[#allocation2] sm:$0xff]
          %v741 = vld [vmem:[#allocation2 + $0x8] sm:$0xff]
          %v742 = vld [vmem:[#allocation2 + $0x10] sm:$0xff]
          %v743 = vld [vmem:[#allocation2 + $0x18] sm:$0xff]
          %v744 = vld [vmem:[#allocation2 + $0x20] sm:$0xff]
          %v745 = vld [vmem:[#allocation2 + $0x28] sm:$0xff]
          %v746 = vld [vmem:[#allocation2 + $0x30] sm:$0xff]
          %v747 = vld [vmem:[#allocation2 + $0x38] sm:$0xff]
          %v748 = vld [vmem:[#allocation2 + $0x40] sm:$0xff]
          %v749 = vld [vmem:[#allocation2 + $0x48] sm:$0xff]
          %v750 = vld [vmem:[#allocation2 + $0x50] sm:$0xff]
          %v751 = vld [vmem:[#allocation2 + $0x58] sm:$0xff]
          %v752 = vld [vmem:[#allocation2 + $0x60] sm:$0xff]
          %v753 = vld [vmem:[#allocation2 + $0x68] sm:$0xff]
          %v754 = vld [vmem:[#allocation2 + $0x70] sm:$0xff]
          %v755 = vld [vmem:[#allocation2 + $0x78] sm:$0xff]
          %v756 = vpack.c.bf16 %v741, %v740
          %v757 = vpack.c.bf16 %v743, %v742
          %v758 = vpack.c.bf16 %v745, %v744
          %v759 = vpack.c.bf16 %v747, %v746
          %v760 = vpack.c.bf16 %v749, %v748
          %v761 = vpack.c.bf16 %v751, %v750
          %v762 = vpack.c.bf16 %v753, %v752
          %v763 = vpack.c.bf16 %v755, %v754
          %v764 = vld [vmem:[%s4] sm:$0xf]
          %v765 = vld [vmem:[%s4 + $0x4] sm:$0xf]
          %v766 = vld [vmem:[%s4 + $0x8] sm:$0xf]
          %v767 = vld [vmem:[%s4 + $0xc] sm:$0xf]
          %v768 = vld [vmem:[%s4 + $0x10] sm:$0xf]
          %v769 = vld [vmem:[%s4 + $0x14] sm:$0xf]
          %v770 = vld [vmem:[%s4 + $0x18] sm:$0xf]
          %v771 = vld [vmem:[%s4 + $0x1c] sm:$0xf]
          %v772 = vld [vmem:[%s4 + $0x20] sm:$0xf]
          %v773 = vld [vmem:[%s4 + $0x24] sm:$0xf]
          %v774 = vld [vmem:[%s4 + $0x28] sm:$0xf]
          %v775 = vld [vmem:[%s4 + $0x2c] sm:$0xf]
          %v776 = vld [vmem:[%s4 + $0x30] sm:$0xf]
          %v777 = vld [vmem:[%s4 + $0x34] sm:$0xf]
          %v778 = vld [vmem:[%s4 + $0x38] sm:$0xf]
          %v779 = vld [vmem:[%s4 + $0x3c] sm:$0xf]
          %v796 = vunpack.c.l.b16 %v764
          %v797 = vunpack.c.l.b16 %v765
          %v798 = vunpack.c.l.b16 %v766
          %v799 = vunpack.c.l.b16 %v767
          %v800 = vunpack.c.l.b16 %v768
          %v801 = vunpack.c.l.b16 %v769
          %v802 = vunpack.c.l.b16 %v770
          %v803 = vunpack.c.l.b16 %v771
          %v804 = vunpack.c.l.b16 %v772
          %v805 = vunpack.c.l.b16 %v773
          %v806 = vunpack.c.l.b16 %v774
          %v807 = vunpack.c.l.b16 %v775
          %v808 = vunpack.c.l.b16 %v776
          %v809 = vunpack.c.l.b16 %v777
          %v810 = vunpack.c.l.b16 %v778
          %v811 = vunpack.c.l.b16 %v779
          %v812 = vpack.c.b16 %v797, %v796
          %v813 = vpack.c.b16 %v799, %v798
          %v814 = vpack.c.b16 %v801, %v800
          %v815 = vpack.c.b16 %v803, %v802
          %v816 = vpack.c.b16 %v805, %v804
          %v817 = vpack.c.b16 %v807, %v806
          %v818 = vpack.c.b16 %v809, %v808
          %v819 = vpack.c.b16 %v811, %v810
          %828 = vmatprep.subr.bf16.mxu0 0
          %829 = vmatpush1.bf16.msra.mxu0 %v819
          %830 = vmatprep.subr.bf16.mxu0 0
          %831 = vmatpush1.bf16.msra.mxu0 %v818
          %832 = vmatprep.subr.bf16.mxu0 0
          %833 = vmatpush1.bf16.msra.mxu0 %v817
          %834 = vmatprep.subr.bf16.mxu0 0
          %835 = vmatpush1.bf16.msra.mxu0 %v816
          %836 = vmatprep.subr.bf16.mxu0 0
          %837 = vmatpush1.bf16.msra.mxu0 %v815
          %838 = vmatprep.subr.bf16.mxu0 0
          %839 = vmatpush1.bf16.msra.mxu0 %v814
          %840 = vmatprep.subr.bf16.mxu0 0
          %841 = vmatpush1.bf16.msra.mxu0 %v813
          %842 = vmatprep.subr.bf16.mxu0 0
          %843 = vmatpush1.bf16.msra.mxu0 %v812
          %844 = vmatprep.subr.bf16.mxu0 0
          %845 = vmatpush2.bf16.msra.mxu0 0
          %846 = vmatprep.subr.bf16.mxu0 0
          %847 = vmatpush2.bf16.msra.mxu0 0
          %848 = vmatprep.subr.bf16.mxu0 0
          %849 = vmatpush2.bf16.msra.mxu0 0
          %850 = vmatprep.subr.bf16.mxu0 0
          %851 = vmatpush2.bf16.msra.mxu0 0
          %852 = vmatprep.subr.bf16.mxu0 0
          %853 = vmatpush2.bf16.msra.mxu0 0
          %854 = vmatprep.subr.bf16.mxu0 0
          %855 = vmatpush2.bf16.msra.mxu0 0
          %856 = vmatprep.subr.bf16.mxu0 0
          %857 = vmatpush2.bf16.msra.mxu0 0
          %858 = vmatprep.subr.bf16.mxu0 0
          %859 = vmatpush2.bf16.msra.mxu0 0
          %860 = vmatprep.mubr.bf16.mxu0 0
          %861 = vmatmul.mubr.bf16.gmra.mxu0 %v756
          %v862 = vpop.f32.mrf.mxu0
          %v863 = vadd.f32 0.0, %v862
          %v864 = vpop.f32.mrf.mxu0
          %v865 = vpop.f32.mrf.mxu0
          %v866 = vadd.f32 0.0, %v865
          %v867 = vpop.f32.mrf.mxu0
          %868 = vmatprep.mubr.bf16.mxu0 0
          %869 = vmatmul.mubr.bf16.gmra.mxu0 %v757
          %v870 = vpop.f32.mrf.mxu0
          %v871 = vadd.f32 0.0, %v870
          %v872 = vpop.f32.mrf.mxu0
          %v873 = vpop.f32.mrf.mxu0
          %v874 = vadd.f32 0.0, %v873
          %v875 = vpop.f32.mrf.mxu0
          %876 = vmatprep.mubr.bf16.mxu0 0
          %877 = vmatmul.mubr.bf16.gmra.mxu0 %v758
          %v878 = vpop.f32.mrf.mxu0
          %v879 = vadd.f32 0.0, %v878
          %v880 = vpop.f32.mrf.mxu0
          %v881 = vpop.f32.mrf.mxu0
          %v882 = vadd.f32 0.0, %v881
          %v883 = vpop.f32.mrf.mxu0
          %884 = vmatprep.mubr.bf16.mxu0 0
          %885 = vmatmul.mubr.bf16.gmra.mxu0 %v759
          %v886 = vpop.f32.mrf.mxu0
          %v887 = vadd.f32 0.0, %v886
          %v888 = vpop.f32.mrf.mxu0
          %v889 = vpop.f32.mrf.mxu0
          %v890 = vadd.f32 0.0, %v889
          %v891 = vpop.f32.mrf.mxu0
          %892 = vmatprep.mubr.bf16.mxu0 0
          %893 = vmatmul.mubr.bf16.gmra.mxu0 %v760
          %v894 = vpop.f32.mrf.mxu0
          %v895 = vadd.f32 0.0, %v894
          %v896 = vpop.f32.mrf.mxu0
          %v897 = vpop.f32.mrf.mxu0
          %v898 = vadd.f32 0.0, %v897
          %v899 = vpop.f32.mrf.mxu0
          %900 = vmatprep.mubr.bf16.mxu0 0
          %901 = vmatmul.mubr.bf16.gmra.mxu0 %v761
          %v902 = vpop.f32.mrf.mxu0
          %v903 = vadd.f32 0.0, %v902
          %v904 = vpop.f32.mrf.mxu0
          %v905 = vpop.f32.mrf.mxu0
          %v906 = vadd.f32 0.0, %v905
          %v907 = vpop.f32.mrf.mxu0
          %908 = vmatprep.mubr.bf16.mxu0 0
          %909 = vmatmul.mubr.bf16.gmra.mxu0 %v762
          %v910 = vpop.f32.mrf.mxu0
          %v911 = vadd.f32 0.0, %v910
          %v912 = vpop.f32.mrf.mxu0
          %v913 = vpop.f32.mrf.mxu0
          %v914 = vadd.f32 0.0, %v913
          %v915 = vpop.f32.mrf.mxu0
          %916 = vmatprep.mubr.bf16.mxu0 0
          %917 = vmatmul.mubr.bf16.gmra.mxu0 %v763
          %v918 = vpop.f32.mrf.mxu0
          %v919 = vadd.f32 0.0, %v918
          %v920 = vpop.f32.mrf.mxu0
          %v921 = vpop.f32.mrf.mxu0
          %v922 = vadd.f32 0.0, %v921
          %v923 = vpop.f32.mrf.mxu0
          %924 = vdwg.mxu0
          %v925 = vpack.c.bf16 %v866, %v863
          %v926 = vpack.c.bf16 %v874, %v871
          %v927 = vpack.c.bf16 %v882, %v879
          %v928 = vpack.c.bf16 %v890, %v887
          %v929 = vpack.c.bf16 %v898, %v895
          %v930 = vpack.c.bf16 %v906, %v903
          %v931 = vpack.c.bf16 %v914, %v911
          %v932 = vpack.c.bf16 %v922, %v919
          %v941 = vunpack.c.l.b16 %v925
          %v942 = vunpack.c.h.b16 %v925
          %v943 = vunpack.c.l.b16 %v926
          %v944 = vunpack.c.h.b16 %v926
          %v945 = vunpack.c.l.b16 %v927
          %v946 = vunpack.c.h.b16 %v927
          %v947 = vunpack.c.l.b16 %v928
          %v948 = vunpack.c.h.b16 %v928
          %v949 = vunpack.c.l.b16 %v929
          %v950 = vunpack.c.h.b16 %v929
          %v951 = vunpack.c.l.b16 %v930
          %v952 = vunpack.c.h.b16 %v930
          %v953 = vunpack.c.l.b16 %v931
          %v954 = vunpack.c.h.b16 %v931
          %v955 = vunpack.c.l.b16 %v932
          %v956 = vunpack.c.h.b16 %v932
          %v957 = vpack.c.b16 %v941, %v941
          %v958 = vpack.c.b16 %v942, %v942
          %v959 = vpack.c.b16 %v943, %v943
          %v960 = vpack.c.b16 %v944, %v944
          %v961 = vpack.c.b16 %v945, %v945
          %v962 = vpack.c.b16 %v946, %v946
          %v963 = vpack.c.b16 %v947, %v947
          %v964 = vpack.c.b16 %v948, %v948
          %v965 = vpack.c.b16 %v949, %v949
          %v966 = vpack.c.b16 %v950, %v950
          %v967 = vpack.c.b16 %v951, %v951
          %v968 = vpack.c.b16 %v952, %v952
          %v969 = vpack.c.b16 %v953, %v953
          %v970 = vpack.c.b16 %v954, %v954
          %v971 = vpack.c.b16 %v955, %v955
          %v972 = vpack.c.b16 %v956, %v956
          %989 = vst [vmem:[%s390] sm:$0xf] %v957
          %990 = vst [vmem:[%s390 + $0x4] sm:$0xf] %v958
          %991 = vst [vmem:[%s390 + $0x8] sm:$0xf] %v959
          %992 = vst [vmem:[%s390 + $0xc] sm:$0xf] %v960
          %993 = vst [vmem:[%s390 + $0x10] sm:$0xf] %v961
          %994 = vst [vmem:[%s390 + $0x14] sm:$0xf] %v962
          %995 = vst [vmem:[%s390 + $0x18] sm:$0xf] %v963
          %996 = vst [vmem:[%s390 + $0x1c] sm:$0xf] %v964
          %997 = vst [vmem:[%s390 + $0x20] sm:$0xf] %v965
          %998 = vst [vmem:[%s390 + $0x24] sm:$0xf] %v966
          %999 = vst [vmem:[%s390 + $0x28] sm:$0xf] %v967
          %1000 = vst [vmem:[%s390 + $0x2c] sm:$0xf] %v968
          %1001 = vst [vmem:[%s390 + $0x30] sm:$0xf] %v969
          %1002 = vst [vmem:[%s390 + $0x34] sm:$0xf] %v970
          %1003 = vst [vmem:[%s390 + $0x38] sm:$0xf] %v971
          %1004 = vst [vmem:[%s390 + $0x3c] sm:$0xf] %v972
        $region89: #{hypergraph_attention_isomorphism.2} parent=76 // pred_fallthru
          _
        %s1005 = smul.u32 16, %s21
        %p1006 = scmp.lt.s32.totalorder %s1005, 47
        %s1007 = scalar_select %p1006, %s1005, 47
        %s1008 = smul.addr %s1007, 4
        %s1009 = scalar_lea.vmem %s5, %s1008
        // Predicated region
        $region90: #{hypergraph_attention_isomorphism.2} parent=76 // pred_check
          %p1010 = pneg %p169
        $region91: #{hypergraph_attention_isomorphism.2} parent=76 // pred_check_branch
          %1012 = sbr.rel (%p1010) target = $region93
        $region92: #{hypergraph_attention_isomorphism.2} parent=76 // pred_region
          %s1013 = smul.u32 16, %s21
        $region93: #{hypergraph_attention_isomorphism.2} parent=76 // pred_fallthru
          _
      $region77: #{hypergraph_attention_isomorphism.2} parent=5 // pred_fallthru
        _
      %p1014 = scmp.le.s32.totalorder 2, %s12
      // Predicated region
      $region94: #{hypergraph_attention_isomorphism.2} parent=5 // pred_check
        %p1015 = pneg %p1014
      $region95: #{hypergraph_attention_isomorphism.2} parent=5 // pred_check_branch
        %1017 = sbr.rel (%p1015) target = $region97
      $region96: #{hypergraph_attention_isomorphism.2} parent=5 // pred_region
        %s1018 = ssub.s32 %s12, 2
        // Predicated region
        $region98: #{hypergraph_attention_isomorphism.2} parent=96 // pred_check
          %p1019 = pneg %p175
        $region99: #{hypergraph_attention_isomorphism.2} parent=96 // pred_check_branch
          %1021 = sbr.rel (%p1019) target = $region101
        $region100: #{hypergraph_attention_isomorphism.2} parent=96 // pred_region
          %s1022 = smul.u32 16, %s23
          %p1023 = scmp.lt.s32.totalorder %s1022, 47
          %s1024 = scalar_select %p1023, %s1022, 47
          %s1025 = smul.addr %s1024, 4
          %s1026 = scalar_lea.vmem %s5, %s1025
        $region101: #{hypergraph_attention_isomorphism.2} parent=96 // pred_fallthru
          _
      $region97: #{hypergraph_attention_isomorphism.2} parent=5 // pred_fallthru
        _
    $region6: #{hypergraph_attention_isomorphism.2} parent=1 // loop_footer
      %s16 = sadd.s32 1, %s12
    $region7: #{hypergraph_attention_isomorphism.2} parent=1 // loop_footer_branch
      %11 = sbr.rel target = $region3
    $region8: #{hypergraph_attention_isomorphism.2} parent=1 // loop_exit
      _

</llo_original>
